<compile_context>
chip_gen: v5e
topology: v5e:2x2
jax: 0.10.0
libtpu: 0.0.40
codegen_flags: <defaults>
</compile_context>

<pallas_src>
import jax
import jax.numpy as jnp
from jax.experimental import pallas as pl
from jax.experimental.pallas import tpu as pltpu


def _round_up(x, m):
    return ((x + m - 1) // m) * m


def _lstm_kernel(x_ref, wih_ref, whh_ref, b_ref, o_ref, xp_ref):
    """Fused input projection + serial LSTM recurrence, all VMEM-resident.

    x_ref  : (T*BP, IN)  time-major, batch-padded input sequence
    wih_ref: (IN, GP)    input->gate weights, gate order (i, f, o, g)
    whh_ref: (HD, GP)    hidden->gate weights, same packing
    b_ref  : (1, GP)     b_ih + b_hh, same packing
    o_ref  : (BP, HD)    final hidden state (batch-padded)
    xp_ref : (T*BP, GP)  VMEM scratch for the fused input projection
    """
    BP, HD = o_ref.shape
    T = x_ref.shape[0] // BP

    # Time-parallel input projection for ALL timesteps in one MXU matmul,
    # written straight into VMEM scratch (never touches HBM).
    xp_ref[...] = (
        jnp.dot(x_ref[...], wih_ref[...], preferred_element_type=jnp.float32)
        + b_ref[...]
    )

    # (HD, GP) = (32, 128) f32 -> 4 vregs; cheap to keep resident across steps.
    whh = whh_ref[...]

    def step(t, carry):
        h_prev, c_prev = carry
        row = pl.multiple_of(t * BP, BP)          # sublane-aligned dynamic slice
        gates = xp_ref[pl.ds(row, BP), :] + jnp.dot(
            h_prev, whh, preferred_element_type=jnp.float32)
        # Packed gate order (i, f, o, g): one sigmoid over the first 3 gates,
        # one tanh over the last -> 2 EUP pushes per step (+ tanh(c_new)).
        sig = jax.nn.sigmoid(gates[:, : 3 * HD])
        g_g = jnp.tanh(gates[:, 3 * HD: 4 * HD])
        i_g = sig[:, 0 * HD: 1 * HD]
        f_g = sig[:, 1 * HD: 2 * HD]
        o_g = sig[:, 2 * HD: 3 * HD]
        c_new = f_g * c_prev + i_g * g_g
        h_new = o_g * jnp.tanh(c_new)
        return (h_new, c_new)

    init = (jnp.zeros((BP, HD), jnp.float32),
            jnp.zeros((BP, HD), jnp.float32))
    # T is small & static: full unroll lets the LLO scheduler overlap MXU/EUP/
    # VPU work of adjacent steps around the serial h/c dependency.
    h_final, _ = jax.lax.fori_loop(0, T, step, init, unroll=True)
    o_ref[...] = h_final


def _lstm_pallas(x2d, w_ih_p, w_hh_p, bias_p, *, BP, HD):
    """x2d: (T*BP, IN); w_ih_p: (IN, GP); w_hh_p: (HD, GP); bias_p: (1, GP)."""
    T_BP, _ = x2d.shape
    GP = w_ih_p.shape[1]
    vmem = pl.BlockSpec(memory_space=pltpu.MemorySpace.VMEM)
    return pl.pallas_call(
        _lstm_kernel,
        out_shape=jax.ShapeDtypeStruct((BP, HD), jnp.float32),
        in_specs=[vmem, vmem, vmem, vmem],
        out_specs=vmem,
        scratch_shapes=[pltpu.VMEM((T_BP, GP), jnp.float32)],
    )(x2d, w_ih_p, w_hh_p, bias_p)


def lstm_module_forward(x, w_ih, w_hh, b_ih, b_hh):
    """Mirrors LSTM.forward of the PyTorch module.

    x: (C, Cc, H, W).  Returns (C, 1, hidden_size)."""
    C, Cc, H, W = x.shape
    IN = Cc * W
    Hd = w_hh.shape[1]

    T = H
    BP = _round_up(max(C, 1), 8)        # pad batch to a full sublane height
    G = 4 * Hd                          # packed gate span (no per-gate padding)
    GP = _round_up(G, 128)              # = 128 for Hd=32: exactly one lane span

    # Per segment i: x[i].permute(1,0,2).reshape(H, Cc*W) -> batched over C.
    x_seq = jnp.transpose(x, (2, 0, 1, 3)).reshape(T, C, IN)        # (T, B, IN)
    x_seq = jnp.pad(x_seq, ((0, 0), (0, BP - C), (0, 0)))           # (T, BP, IN)
    x2d = x_seq.reshape(T * BP, IN).astype(jnp.float32)             # (T*BP, IN)

    # Repack weights/bias: torch gate order (i, f, g, o) -> (i, f, o, g) so the
    # kernel applies sigmoid to one contiguous slab and tanh to one slab.
    # Any lane padding (GP > 4*Hd) is zero-filled and never read by the kernel.
    def repack(m_t):                    # m_t: (..., 4*Hd), gate-major columns
        i, f, g, o = jnp.split(m_t, 4, axis=-1)
        out = jnp.concatenate([i, f, o, g], axis=-1)
        if GP > G:
            pad = [(0, 0)] * (out.ndim - 1) + [(0, GP - G)]
            out = jnp.pad(out, pad)
        return out.astype(jnp.float32)

    w_ih_p = repack(jnp.transpose(w_ih))                            # (IN, GP)
    w_hh_p = repack(jnp.transpose(w_hh))                            # (Hd, GP)
    bias_p = repack((b_ih + b_hh)[None, :])                         # (1, GP)

    h_pad = _lstm_pallas(x2d, w_ih_p, w_hh_p, bias_p, BP=BP, HD=Hd)  # (BP, Hd)
    hn = h_pad[:C]                                                   # (C, Hd)
    return hn[:, None, :]                                            # (C, 1, Hd)


def _reference_forward(x, w_ih, w_hh, b_ih, b_hh):
    """Pure-JAX reference with the same semantics (for validation)."""
    C, Cc, H, W = x.shape
    Hd = w_hh.shape[1]
    x_seq = jnp.transpose(x, (2, 0, 1, 3)).reshape(H, C, Cc * W)

    def step(carry, xt):
        h, c = carry
        gates = xt @ w_ih.T + b_ih + h @ w_hh.T + b_hh
        i, f, g, o = jnp.split(gates, 4, axis=-1)
        i, f, o = jax.nn.sigmoid(i), jax.nn.sigmoid(f), jax.nn.sigmoid(o)
        g = jnp.tanh(g)
        c = f * c + i * g
        h = o * jnp.tanh(c)
        return (h, c), None

    h0 = jnp.zeros((C, Hd), jnp.float32)
    (hT, _), _ = jax.lax.scan(step, (h0, h0), x_seq)
    return hT[:, None, :]


if __name__ == "__main__":
    # Shapes implied by the module: x is (C, Cc, H, W); input_size = Cc * W.
    C, Cc, H, W = 2, 4, 16, 16
    input_size = Cc * W          # 64
    hidden_size = 32             # 4*hidden = 128 -> one lane span of gates

    key = jax.random.PRNGKey(0)
    kx, k1, k2, k3, k4 = jax.random.split(key, 5)

    x = jax.random.normal(kx, (C, Cc, H, W), dtype=jnp.float32)

    # Deterministic param init (uniform(-1/sqrt(Hd), 1/sqrt(Hd)), like torch).
    s = float(hidden_size) ** -0.5
    w_ih = jax.random.uniform(k1, (4 * hidden_size, input_size), jnp.float32, -s, s)
    w_hh = jax.random.uniform(k2, (4 * hidden_size, hidden_size), jnp.float32, -s, s)
    b_ih = jax.random.uniform(k3, (4 * hidden_size,), jnp.float32, -s, s)
    b_hh = jax.random.uniform(k4, (4 * hidden_size,), jnp.float32, -s, s)

    fwd = jax.jit(lstm_module_forward)
    out = jax.block_until_ready(fwd(x, w_ih, w_hh, b_ih, b_hh))

    ref = jax.block_until_ready(jax.jit(_reference_forward)(x, w_ih, w_hh, b_ih, b_hh))
    assert out.shape == (C, 1, hidden_size), out.shape
    # Tolerance covers MXU rounding of f32 operands at default matmul precision
    # across the 16-step recurrence; real semantic bugs (gate order / indexing)
    # produce errors orders of magnitude larger.
    assert jnp.allclose(out, ref, atol=1e-3, rtol=1e-3), "mismatch vs reference"

    print("KERNEL_OK")
</pallas_src>

<mosaic_0001>
module attributes {stable_mosaic.version = 11 : i64} {
  func.func @_lstm_kernel(%arg0: memref<128x64xf32, #tpu.memory_space<vmem>>, %arg1: memref<64x128xf32, #tpu.memory_space<vmem>>, %arg2: memref<32x128xf32, #tpu.memory_space<vmem>>, %arg3: memref<1x128xf32, #tpu.memory_space<vmem>>, %arg4: memref<8x32xf32, #tpu.memory_space<vmem>>, %arg5: memref<128x128xf32, #tpu.memory_space<vmem>>) attributes {dimension_semantics = [], scalar_prefetch = 0 : i64, scratch_operands = 1 : i64, tpu.core_type = #tpu.core_type<tc>} {
    %c0 = arith.constant 0 : index
    %c0_0 = arith.constant 0 : index
    %0 = vector.load %arg0[%c0, %c0_0] : memref<128x64xf32, #tpu.memory_space<vmem>>, vector<128x64xf32>
    %c0_1 = arith.constant 0 : index
    %c0_2 = arith.constant 0 : index
    %1 = vector.load %arg1[%c0_1, %c0_2] : memref<64x128xf32, #tpu.memory_space<vmem>>, vector<64x128xf32>
    %cst = arith.constant dense<0.000000e+00> : vector<128x128xf32>
    %2 = tpu.matmul %0, %1, %cst {dimension_numbers = #tpu.dot_dimension_numbers<[1], [0], [0], [1], [0, 0, 1, 1], [], []>} : vector<128x64xf32>, vector<64x128xf32>, vector<128x128xf32> -> vector<128x128xf32>
    %c0_3 = arith.constant 0 : index
    %c0_4 = arith.constant 0 : index
    %3 = vector.load %arg3[%c0_3, %c0_4] : memref<1x128xf32, #tpu.memory_space<vmem>>, vector<1x128xf32>
    %4 = vector.broadcast %3 : vector<1x128xf32> to vector<128x128xf32>
    %5 = arith.addf %2, %4 : vector<128x128xf32>
    %c0_5 = arith.constant 0 : index
    %c0_6 = arith.constant 0 : index
    %6 = vector.load %arg5[%c0_5, %c0_6] : memref<128x128xf32, #tpu.memory_space<vmem>>, vector<128x128xf32>
    tpu.vector_store %arg5[%c0_5, %c0_6], %5 {strides = array<i32>} : memref<128x128xf32, #tpu.memory_space<vmem>>, vector<128x128xf32>,
    %c0_7 = arith.constant 0 : index
    %c0_8 = arith.constant 0 : index
    %7 = vector.load %arg2[%c0_7, %c0_8] : memref<32x128xf32, #tpu.memory_space<vmem>>, vector<32x128xf32>
    %cst_9 = arith.constant 0.000000e+00 : f32
    %8 = vector.broadcast %cst_9 : f32 to vector<8x32xf32>
    %cst_10 = arith.constant 0.000000e+00 : f32
    %9 = vector.broadcast %cst_10 : f32 to vector<8x32xf32>
    %c0_i32 = arith.constant 0 : i32
    %c8_i32 = arith.constant 8 : i32
    %10 = arith.muli %c0_i32, %c8_i32 : i32
    %11 = tpu.assume_multiple %10, 8 : i32
    %12 = arith.index_cast %11 : i32 to index
    %c0_11 = arith.constant 0 : index
    %13 = vector.load %arg5[%12, %c0_11] : memref<128x128xf32, #tpu.memory_space<vmem>>, vector<8x128xf32>
    %cst_12 = arith.constant dense<0.000000e+00> : vector<8x128xf32>
    %14 = tpu.matmul %8, %7, %cst_12 {dimension_numbers = #tpu.dot_dimension_numbers<[1], [0], [0], [1], [0, 0, 1, 1], [], []>} : vector<8x32xf32>, vector<32x128xf32>, vector<8x128xf32> -> vector<8x128xf32>
    %15 = arith.addf %13, %14 : vector<8x128xf32>
    %16 = vector.extract_strided_slice %15 {offsets = [0, 0], sizes = [8, 96], strides = [1, 1]} : vector<8x128xf32> to vector<8x96xf32>
    %17 = arith.negf %16 : vector<8x96xf32>
    %18 = math.exp %17 : vector<8x96xf32>
    %cst_13 = arith.constant 1.000000e+00 : f32
    %19 = vector.broadcast %cst_13 : f32 to vector<8x96xf32>
    %20 = arith.addf %19, %18 : vector<8x96xf32>
    %21 = arith.divf %19, %20 : vector<8x96xf32>
    %22 = vector.extract_strided_slice %15 {offsets = [0, 96], sizes = [8, 32], strides = [1, 1]} : vector<8x128xf32> to vector<8x32xf32>
    %23 = math.tanh %22 : vector<8x32xf32>
    %24 = vector.extract_strided_slice %21 {offsets = [0, 0], sizes = [8, 32], strides = [1, 1]} : vector<8x96xf32> to vector<8x32xf32>
    %25 = vector.extract_strided_slice %21 {offsets = [0, 32], sizes = [8, 32], strides = [1, 1]} : vector<8x96xf32> to vector<8x32xf32>
    %26 = vector.extract_strided_slice %21 {offsets = [0, 64], sizes = [8, 32], strides = [1, 1]} : vector<8x96xf32> to vector<8x32xf32>
    %27 = arith.mulf %25, %9 : vector<8x32xf32>
    %28 = arith.mulf %24, %23 : vector<8x32xf32>
    %29 = arith.addf %27, %28 : vector<8x32xf32>
    %30 = math.tanh %29 : vector<8x32xf32>
    %31 = arith.mulf %26, %30 : vector<8x32xf32>
    %c1_i32 = arith.constant 1 : i32
    %c8_i32_14 = arith.constant 8 : i32
    %32 = arith.muli %c1_i32, %c8_i32_14 : i32
    %33 = tpu.assume_multiple %32, 8 : i32
    %34 = arith.index_cast %33 : i32 to index
    %c0_15 = arith.constant 0 : index
    %35 = vector.load %arg5[%34, %c0_15] : memref<128x128xf32, #tpu.memory_space<vmem>>, vector<8x128xf32>
    %cst_16 = arith.constant dense<0.000000e+00> : vector<8x128xf32>
    %36 = tpu.matmul %31, %7, %cst_16 {dimension_numbers = #tpu.dot_dimension_numbers<[1], [0], [0], [1], [0, 0, 1, 1], [], []>} : vector<8x32xf32>, vector<32x128xf32>, vector<8x128xf32> -> vector<8x128xf32>
    %37 = arith.addf %35, %36 : vector<8x128xf32>
    %38 = vector.extract_strided_slice %37 {offsets = [0, 0], sizes = [8, 96], strides = [1, 1]} : vector<8x128xf32> to vector<8x96xf32>
    %39 = arith.negf %38 : vector<8x96xf32>
    %40 = math.exp %39 : vector<8x96xf32>
    %cst_17 = arith.constant 1.000000e+00 : f32
    %41 = vector.broadcast %cst_17 : f32 to vector<8x96xf32>
    %42 = arith.addf %41, %40 : vector<8x96xf32>
    %43 = arith.divf %41, %42 : vector<8x96xf32>
    %44 = vector.extract_strided_slice %37 {offsets = [0, 96], sizes = [8, 32], strides = [1, 1]} : vector<8x128xf32> to vector<8x32xf32>
    %45 = math.tanh %44 : vector<8x32xf32>
    %46 = vector.extract_strided_slice %43 {offsets = [0, 0], sizes = [8, 32], strides = [1, 1]} : vector<8x96xf32> to vector<8x32xf32>
    %47 = vector.extract_strided_slice %43 {offsets = [0, 32], sizes = [8, 32], strides = [1, 1]} : vector<8x96xf32> to vector<8x32xf32>
    %48 = vector.extract_strided_slice %43 {offsets = [0, 64], sizes = [8, 32], strides = [1, 1]} : vector<8x96xf32> to vector<8x32xf32>
    %49 = arith.mulf %47, %29 : vector<8x32xf32>
    %50 = arith.mulf %46, %45 : vector<8x32xf32>
    %51 = arith.addf %49, %50 : vector<8x32xf32>
    %52 = math.tanh %51 : vector<8x32xf32>
    %53 = arith.mulf %48, %52 : vector<8x32xf32>
    %c2_i32 = arith.constant 2 : i32
    %c8_i32_18 = arith.constant 8 : i32
    %54 = arith.muli %c2_i32, %c8_i32_18 : i32
    %55 = tpu.assume_multiple %54, 8 : i32
    %56 = arith.index_cast %55 : i32 to index
    %c0_19 = arith.constant 0 : index
    %57 = vector.load %arg5[%56, %c0_19] : memref<128x128xf32, #tpu.memory_space<vmem>>, vector<8x128xf32>
    %cst_20 = arith.constant dense<0.000000e+00> : vector<8x128xf32>
    %58 = tpu.matmul %53, %7, %cst_20 {dimension_numbers = #tpu.dot_dimension_numbers<[1], [0], [0], [1], [0, 0, 1, 1], [], []>} : vector<8x32xf32>, vector<32x128xf32>, vector<8x128xf32> -> vector<8x128xf32>
    %59 = arith.addf %57, %58 : vector<8x128xf32>
    %60 = vector.extract_strided_slice %59 {offsets = [0, 0], sizes = [8, 96], strides = [1, 1]} : vector<8x128xf32> to vector<8x96xf32>
    %61 = arith.negf %60 : vector<8x96xf32>
    %62 = math.exp %61 : vector<8x96xf32>
    %cst_21 = arith.constant 1.000000e+00 : f32
    %63 = vector.broadcast %cst_21 : f32 to vector<8x96xf32>
    %64 = arith.addf %63, %62 : vector<8x96xf32>
    %65 = arith.divf %63, %64 : vector<8x96xf32>
    %66 = vector.extract_strided_slice %59 {offsets = [0, 96], sizes = [8, 32], strides = [1, 1]} : vector<8x128xf32> to vector<8x32xf32>
    %67 = math.tanh %66 : vector<8x32xf32>
    %68 = vector.extract_strided_slice %65 {offsets = [0, 0], sizes = [8, 32], strides = [1, 1]} : vector<8x96xf32> to vector<8x32xf32>
    %69 = vector.extract_strided_slice %65 {offsets = [0, 32], sizes = [8, 32], strides = [1, 1]} : vector<8x96xf32> to vector<8x32xf32>
    %70 = vector.extract_strided_slice %65 {offsets = [0, 64], sizes = [8, 32], strides = [1, 1]} : vector<8x96xf32> to vector<8x32xf32>
    %71 = arith.mulf %69, %51 : vector<8x32xf32>
    %72 = arith.mulf %68, %67 : vector<8x32xf32>
    %73 = arith.addf %71, %72 : vector<8x32xf32>
    %74 = math.tanh %73 : vector<8x32xf32>
    %75 = arith.mulf %70, %74 : vector<8x32xf32>
    %c3_i32 = arith.constant 3 : i32
    %c8_i32_22 = arith.constant 8 : i32
    %76 = arith.muli %c3_i32, %c8_i32_22 : i32
    %77 = tpu.assume_multiple %76, 8 : i32
    %78 = arith.index_cast %77 : i32 to index
    %c0_23 = arith.constant 0 : index
    %79 = vector.load %arg5[%78, %c0_23] : memref<128x128xf32, #tpu.memory_space<vmem>>, vector<8x128xf32>
    %cst_24 = arith.constant dense<0.000000e+00> : vector<8x128xf32>
    %80 = tpu.matmul %75, %7, %cst_24 {dimension_numbers = #tpu.dot_dimension_numbers<[1], [0], [0], [1], [0, 0, 1, 1], [], []>} : vector<8x32xf32>, vector<32x128xf32>, vector<8x128xf32> -> vector<8x128xf32>
    %81 = arith.addf %79, %80 : vector<8x128xf32>
    %82 = vector.extract_strided_slice %81 {offsets = [0, 0], sizes = [8, 96], strides = [1, 1]} : vector<8x128xf32> to vector<8x96xf32>
    %83 = arith.negf %82 : vector<8x96xf32>
    %84 = math.exp %83 : vector<8x96xf32>
    %cst_25 = arith.constant 1.000000e+00 : f32
    %85 = vector.broadcast %cst_25 : f32 to vector<8x96xf32>
    %86 = arith.addf %85, %84 : vector<8x96xf32>
    %87 = arith.divf %85, %86 : vector<8x96xf32>
    %88 = vector.extract_strided_slice %81 {offsets = [0, 96], sizes = [8, 32], strides = [1, 1]} : vector<8x128xf32> to vector<8x32xf32>
    %89 = math.tanh %88 : vector<8x32xf32>
    %90 = vector.extract_strided_slice %87 {offsets = [0, 0], sizes = [8, 32], strides = [1, 1]} : vector<8x96xf32> to vector<8x32xf32>
    %91 = vector.extract_strided_slice %87 {offsets = [0, 32], sizes = [8, 32], strides = [1, 1]} : vector<8x96xf32> to vector<8x32xf32>
    %92 = vector.extract_strided_slice %87 {offsets = [0, 64], sizes = [8, 32], strides = [1, 1]} : vector<8x96xf32> to vector<8x32xf32>
    %93 = arith.mulf %91, %73 : vector<8x32xf32>
    %94 = arith.mulf %90, %89 : vector<8x32xf32>
    %95 = arith.addf %93, %94 : vector<8x32xf32>
    %96 = math.tanh %95 : vector<8x32xf32>
    %97 = arith.mulf %92, %96 : vector<8x32xf32>
    %c4_i32 = arith.constant 4 : i32
    %c8_i32_26 = arith.constant 8 : i32
    %98 = arith.muli %c4_i32, %c8_i32_26 : i32
    %99 = tpu.assume_multiple %98, 8 : i32
    %100 = arith.index_cast %99 : i32 to index
    %c0_27 = arith.constant 0 : index
    %101 = vector.load %arg5[%100, %c0_27] : memref<128x128xf32, #tpu.memory_space<vmem>>, vector<8x128xf32>
    %cst_28 = arith.constant dense<0.000000e+00> : vector<8x128xf32>
    %102 = tpu.matmul %97, %7, %cst_28 {dimension_numbers = #tpu.dot_dimension_numbers<[1], [0], [0], [1], [0, 0, 1, 1], [], []>} : vector<8x32xf32>, vector<32x128xf32>, vector<8x128xf32> -> vector<8x128xf32>
    %103 = arith.addf %101, %102 : vector<8x128xf32>
    %104 = vector.extract_strided_slice %103 {offsets = [0, 0], sizes = [8, 96], strides = [1, 1]} : vector<8x128xf32> to vector<8x96xf32>
    %105 = arith.negf %104 : vector<8x96xf32>
    %106 = math.exp %105 : vector<8x96xf32>
    %cst_29 = arith.constant 1.000000e+00 : f32
    %107 = vector.broadcast %cst_29 : f32 to vector<8x96xf32>
    %108 = arith.addf %107, %106 : vector<8x96xf32>
    %109 = arith.divf %107, %108 : vector<8x96xf32>
    %110 = vector.extract_strided_slice %103 {offsets = [0, 96], sizes = [8, 32], strides = [1, 1]} : vector<8x128xf32> to vector<8x32xf32>
    %111 = math.tanh %110 : vector<8x32xf32>
    %112 = vector.extract_strided_slice %109 {offsets = [0, 0], sizes = [8, 32], strides = [1, 1]} : vector<8x96xf32> to vector<8x32xf32>
    %113 = vector.extract_strided_slice %109 {offsets = [0, 32], sizes = [8, 32], strides = [1, 1]} : vector<8x96xf32> to vector<8x32xf32>
    %114 = vector.extract_strided_slice %109 {offsets = [0, 64], sizes = [8, 32], strides = [1, 1]} : vector<8x96xf32> to vector<8x32xf32>
    %115 = arith.mulf %113, %95 : vector<8x32xf32>
    %116 = arith.mulf %112, %111 : vector<8x32xf32>
    %117 = arith.addf %115, %116 : vector<8x32xf32>
    %118 = math.tanh %117 : vector<8x32xf32>
    %119 = arith.mulf %114, %118 : vector<8x32xf32>
    %c5_i32 = arith.constant 5 : i32
    %c8_i32_30 = arith.constant 8 : i32
    %120 = arith.muli %c5_i32, %c8_i32_30 : i32
    %121 = tpu.assume_multiple %120, 8 : i32
    %122 = arith.index_cast %121 : i32 to index
    %c0_31 = arith.constant 0 : index
    %123 = vector.load %arg5[%122, %c0_31] : memref<128x128xf32, #tpu.memory_space<vmem>>, vector<8x128xf32>
    %cst_32 = arith.constant dense<0.000000e+00> : vector<8x128xf32>
    %124 = tpu.matmul %119, %7, %cst_32 {dimension_numbers = #tpu.dot_dimension_numbers<[1], [0], [0], [1], [0, 0, 1, 1], [], []>} : vector<8x32xf32>, vector<32x128xf32>, vector<8x128xf32> -> vector<8x128xf32>
    %125 = arith.addf %123, %124 : vector<8x128xf32>
    %126 = vector.extract_strided_slice %125 {offsets = [0, 0], sizes = [8, 96], strides = [1, 1]} : vector<8x128xf32> to vector<8x96xf32>
    %127 = arith.negf %126 : vector<8x96xf32>
    %128 = math.exp %127 : vector<8x96xf32>
    %cst_33 = arith.constant 1.000000e+00 : f32
    %129 = vector.broadcast %cst_33 : f32 to vector<8x96xf32>
    %130 = arith.addf %129, %128 : vector<8x96xf32>
    %131 = arith.divf %129, %130 : vector<8x96xf32>
    %132 = vector.extract_strided_slice %125 {offsets = [0, 96], sizes = [8, 32], strides = [1, 1]} : vector<8x128xf32> to vector<8x32xf32>
    %133 = math.tanh %132 : vector<8x32xf32>
    %134 = vector.extract_strided_slice %131 {offsets = [0, 0], sizes = [8, 32], strides = [1, 1]} : vector<8x96xf32> to vector<8x32xf32>
    %135 = vector.extract_strided_slice %131 {offsets = [0, 32], sizes = [8, 32], strides = [1, 1]} : vector<8x96xf32> to vector<8x32xf32>
    %136 = vector.extract_strided_slice %131 {offsets = [0, 64], sizes = [8, 32], strides = [1, 1]} : vector<8x96xf32> to vector<8x32xf32>
    %137 = arith.mulf %135, %117 : vector<8x32xf32>
    %138 = arith.mulf %134, %133 : vector<8x32xf32>
    %139 = arith.addf %137, %138 : vector<8x32xf32>
    %140 = math.tanh %139 : vector<8x32xf32>
    %141 = arith.mulf %136, %140 : vector<8x32xf32>
    %c6_i32 = arith.constant 6 : i32
    %c8_i32_34 = arith.constant 8 : i32
    %142 = arith.muli %c6_i32, %c8_i32_34 : i32
    %143 = tpu.assume_multiple %142, 8 : i32
    %144 = arith.index_cast %143 : i32 to index
    %c0_35 = arith.constant 0 : index
    %145 = vector.load %arg5[%144, %c0_35] : memref<128x128xf32, #tpu.memory_space<vmem>>, vector<8x128xf32>
    %cst_36 = arith.constant dense<0.000000e+00> : vector<8x128xf32>
    %146 = tpu.matmul %141, %7, %cst_36 {dimension_numbers = #tpu.dot_dimension_numbers<[1], [0], [0], [1], [0, 0, 1, 1], [], []>} : vector<8x32xf32>, vector<32x128xf32>, vector<8x128xf32> -> vector<8x128xf32>
    %147 = arith.addf %145, %146 : vector<8x128xf32>
    %148 = vector.extract_strided_slice %147 {offsets = [0, 0], sizes = [8, 96], strides = [1, 1]} : vector<8x128xf32> to vector<8x96xf32>
    %149 = arith.negf %148 : vector<8x96xf32>
    %150 = math.exp %149 : vector<8x96xf32>
    %cst_37 = arith.constant 1.000000e+00 : f32
    %151 = vector.broadcast %cst_37 : f32 to vector<8x96xf32>
    %152 = arith.addf %151, %150 : vector<8x96xf32>
    %153 = arith.divf %151, %152 : vector<8x96xf32>
    %154 = vector.extract_strided_slice %147 {offsets = [0, 96], sizes = [8, 32], strides = [1, 1]} : vector<8x128xf32> to vector<8x32xf32>
    %155 = math.tanh %154 : vector<8x32xf32>
    %156 = vector.extract_strided_slice %153 {offsets = [0, 0], sizes = [8, 32], strides = [1, 1]} : vector<8x96xf32> to vector<8x32xf32>
    %157 = vector.extract_strided_slice %153 {offsets = [0, 32], sizes = [8, 32], strides = [1, 1]} : vector<8x96xf32> to vector<8x32xf32>
    %158 = vector.extract_strided_slice %153 {offsets = [0, 64], sizes = [8, 32], strides = [1, 1]} : vector<8x96xf32> to vector<8x32xf32>
    %159 = arith.mulf %157, %139 : vector<8x32xf32>
    %160 = arith.mulf %156, %155 : vector<8x32xf32>
    %161 = arith.addf %159, %160 : vector<8x32xf32>
    %162 = math.tanh %161 : vector<8x32xf32>
    %163 = arith.mulf %158, %162 : vector<8x32xf32>
    %c7_i32 = arith.constant 7 : i32
    %c8_i32_38 = arith.constant 8 : i32
    %164 = arith.muli %c7_i32, %c8_i32_38 : i32
    %165 = tpu.assume_multiple %164, 8 : i32
    %166 = arith.index_cast %165 : i32 to index
    %c0_39 = arith.constant 0 : index
    %167 = vector.load %arg5[%166, %c0_39] : memref<128x128xf32, #tpu.memory_space<vmem>>, vector<8x128xf32>
    %cst_40 = arith.constant dense<0.000000e+00> : vector<8x128xf32>
    %168 = tpu.matmul %163, %7, %cst_40 {dimension_numbers = #tpu.dot_dimension_numbers<[1], [0], [0], [1], [0, 0, 1, 1], [], []>} : vector<8x32xf32>, vector<32x128xf32>, vector<8x128xf32> -> vector<8x128xf32>
    %169 = arith.addf %167, %168 : vector<8x128xf32>
    %170 = vector.extract_strided_slice %169 {offsets = [0, 0], sizes = [8, 96], strides = [1, 1]} : vector<8x128xf32> to vector<8x96xf32>
    %171 = arith.negf %170 : vector<8x96xf32>
    %172 = math.exp %171 : vector<8x96xf32>
    %cst_41 = arith.constant 1.000000e+00 : f32
    %173 = vector.broadcast %cst_41 : f32 to vector<8x96xf32>
    %174 = arith.addf %173, %172 : vector<8x96xf32>
    %175 = arith.divf %173, %174 : vector<8x96xf32>
    %176 = vector.extract_strided_slice %169 {offsets = [0, 96], sizes = [8, 32], strides = [1, 1]} : vector<8x128xf32> to vector<8x32xf32>
    %177 = math.tanh %176 : vector<8x32xf32>
    %178 = vector.extract_strided_slice %175 {offsets = [0, 0], sizes = [8, 32], strides = [1, 1]} : vector<8x96xf32> to vector<8x32xf32>
    %179 = vector.extract_strided_slice %175 {offsets = [0, 32], sizes = [8, 32], strides = [1, 1]} : vector<8x96xf32> to vector<8x32xf32>
    %180 = vector.extract_strided_slice %175 {offsets = [0, 64], sizes = [8, 32], strides = [1, 1]} : vector<8x96xf32> to vector<8x32xf32>
    %181 = arith.mulf %179, %161 : vector<8x32xf32>
    %182 = arith.mulf %178, %177 : vector<8x32xf32>
    %183 = arith.addf %181, %182 : vector<8x32xf32>
    %184 = math.tanh %183 : vector<8x32xf32>
    %185 = arith.mulf %180, %184 : vector<8x32xf32>
    %c8_i32_42 = arith.constant 8 : i32
    %c8_i32_43 = arith.constant 8 : i32
    %186 = arith.muli %c8_i32_42, %c8_i32_43 : i32
    %187 = tpu.assume_multiple %186, 8 : i32
    %188 = arith.index_cast %187 : i32 to index
    %c0_44 = arith.constant 0 : index
    %189 = vector.load %arg5[%188, %c0_44] : memref<128x128xf32, #tpu.memory_space<vmem>>, vector<8x128xf32>
    %cst_45 = arith.constant dense<0.000000e+00> : vector<8x128xf32>
    %190 = tpu.matmul %185, %7, %cst_45 {dimension_numbers = #tpu.dot_dimension_numbers<[1], [0], [0], [1], [0, 0, 1, 1], [], []>} : vector<8x32xf32>, vector<32x128xf32>, vector<8x128xf32> -> vector<8x128xf32>
    %191 = arith.addf %189, %190 : vector<8x128xf32>
    %192 = vector.extract_strided_slice %191 {offsets = [0, 0], sizes = [8, 96], strides = [1, 1]} : vector<8x128xf32> to vector<8x96xf32>
    %193 = arith.negf %192 : vector<8x96xf32>
    %194 = math.exp %193 : vector<8x96xf32>
    %cst_46 = arith.constant 1.000000e+00 : f32
    %195 = vector.broadcast %cst_46 : f32 to vector<8x96xf32>
    %196 = arith.addf %195, %194 : vector<8x96xf32>
    %197 = arith.divf %195, %196 : vector<8x96xf32>
    %198 = vector.extract_strided_slice %191 {offsets = [0, 96], sizes = [8, 32], strides = [1, 1]} : vector<8x128xf32> to vector<8x32xf32>
    %199 = math.tanh %198 : vector<8x32xf32>
    %200 = vector.extract_strided_slice %197 {offsets = [0, 0], sizes = [8, 32], strides = [1, 1]} : vector<8x96xf32> to vector<8x32xf32>
    %201 = vector.extract_strided_slice %197 {offsets = [0, 32], sizes = [8, 32], strides = [1, 1]} : vector<8x96xf32> to vector<8x32xf32>
    %202 = vector.extract_strided_slice %197 {offsets = [0, 64], sizes = [8, 32], strides = [1, 1]} : vector<8x96xf32> to vector<8x32xf32>
    %203 = arith.mulf %201, %183 : vector<8x32xf32>
    %204 = arith.mulf %200, %199 : vector<8x32xf32>
    %205 = arith.addf %203, %204 : vector<8x32xf32>
    %206 = math.tanh %205 : vector<8x32xf32>
    %207 = arith.mulf %202, %206 : vector<8x32xf32>
    %c9_i32 = arith.constant 9 : i32
    %c8_i32_47 = arith.constant 8 : i32
    %208 = arith.muli %c9_i32, %c8_i32_47 : i32
    %209 = tpu.assume_multiple %208, 8 : i32
    %210 = arith.index_cast %209 : i32 to index
    %c0_48 = arith.constant 0 : index
    %211 = vector.load %arg5[%210, %c0_48] : memref<128x128xf32, #tpu.memory_space<vmem>>, vector<8x128xf32>
    %cst_49 = arith.constant dense<0.000000e+00> : vector<8x128xf32>
    %212 = tpu.matmul %207, %7, %cst_49 {dimension_numbers = #tpu.dot_dimension_numbers<[1], [0], [0], [1], [0, 0, 1, 1], [], []>} : vector<8x32xf32>, vector<32x128xf32>, vector<8x128xf32> -> vector<8x128xf32>
    %213 = arith.addf %211, %212 : vector<8x128xf32>
    %214 = vector.extract_strided_slice %213 {offsets = [0, 0], sizes = [8, 96], strides = [1, 1]} : vector<8x128xf32> to vector<8x96xf32>
    %215 = arith.negf %214 : vector<8x96xf32>
    %216 = math.exp %215 : vector<8x96xf32>
    %cst_50 = arith.constant 1.000000e+00 : f32
    %217 = vector.broadcast %cst_50 : f32 to vector<8x96xf32>
    %218 = arith.addf %217, %216 : vector<8x96xf32>
    %219 = arith.divf %217, %218 : vector<8x96xf32>
    %220 = vector.extract_strided_slice %213 {offsets = [0, 96], sizes = [8, 32], strides = [1, 1]} : vector<8x128xf32> to vector<8x32xf32>
    %221 = math.tanh %220 : vector<8x32xf32>
    %222 = vector.extract_strided_slice %219 {offsets = [0, 0], sizes = [8, 32], strides = [1, 1]} : vector<8x96xf32> to vector<8x32xf32>
    %223 = vector.extract_strided_slice %219 {offsets = [0, 32], sizes = [8, 32], strides = [1, 1]} : vector<8x96xf32> to vector<8x32xf32>
    %224 = vector.extract_strided_slice %219 {offsets = [0, 64], sizes = [8, 32], strides = [1, 1]} : vector<8x96xf32> to vector<8x32xf32>
    %225 = arith.mulf %223, %205 : vector<8x32xf32>
    %226 = arith.mulf %222, %221 : vector<8x32xf32>
    %227 = arith.addf %225, %226 : vector<8x32xf32>
    %228 = math.tanh %227 : vector<8x32xf32>
    %229 = arith.mulf %224, %228 : vector<8x32xf32>
    %c10_i32 = arith.constant 10 : i32
    %c8_i32_51 = arith.constant 8 : i32
    %230 = arith.muli %c10_i32, %c8_i32_51 : i32
    %231 = tpu.assume_multiple %230, 8 : i32
    %232 = arith.index_cast %231 : i32 to index
    %c0_52 = arith.constant 0 : index
    %233 = vector.load %arg5[%232, %c0_52] : memref<128x128xf32, #tpu.memory_space<vmem>>, vector<8x128xf32>
    %cst_53 = arith.constant dense<0.000000e+00> : vector<8x128xf32>
    %234 = tpu.matmul %229, %7, %cst_53 {dimension_numbers = #tpu.dot_dimension_numbers<[1], [0], [0], [1], [0, 0, 1, 1], [], []>} : vector<8x32xf32>, vector<32x128xf32>, vector<8x128xf32> -> vector<8x128xf32>
    %235 = arith.addf %233, %234 : vector<8x128xf32>
    %236 = vector.extract_strided_slice %235 {offsets = [0, 0], sizes = [8, 96], strides = [1, 1]} : vector<8x128xf32> to vector<8x96xf32>
    %237 = arith.negf %236 : vector<8x96xf32>
    %238 = math.exp %237 : vector<8x96xf32>
    %cst_54 = arith.constant 1.000000e+00 : f32
    %239 = vector.broadcast %cst_54 : f32 to vector<8x96xf32>
    %240 = arith.addf %239, %238 : vector<8x96xf32>
    %241 = arith.divf %239, %240 : vector<8x96xf32>
    %242 = vector.extract_strided_slice %235 {offsets = [0, 96], sizes = [8, 32], strides = [1, 1]} : vector<8x128xf32> to vector<8x32xf32>
    %243 = math.tanh %242 : vector<8x32xf32>
    %244 = vector.extract_strided_slice %241 {offsets = [0, 0], sizes = [8, 32], strides = [1, 1]} : vector<8x96xf32> to vector<8x32xf32>
    %245 = vector.extract_strided_slice %241 {offsets = [0, 32], sizes = [8, 32], strides = [1, 1]} : vector<8x96xf32> to vector<8x32xf32>
    %246 = vector.extract_strided_slice %241 {offsets = [0, 64], sizes = [8, 32], strides = [1, 1]} : vector<8x96xf32> to vector<8x32xf32>
    %247 = arith.mulf %245, %227 : vector<8x32xf32>
    %248 = arith.mulf %244, %243 : vector<8x32xf32>
    %249 = arith.addf %247, %248 : vector<8x32xf32>
    %250 = math.tanh %249 : vector<8x32xf32>
    %251 = arith.mulf %246, %250 : vector<8x32xf32>
    %c11_i32 = arith.constant 11 : i32
    %c8_i32_55 = arith.constant 8 : i32
    %252 = arith.muli %c11_i32, %c8_i32_55 : i32
    %253 = tpu.assume_multiple %252, 8 : i32
    %254 = arith.index_cast %253 : i32 to index
    %c0_56 = arith.constant 0 : index
    %255 = vector.load %arg5[%254, %c0_56] : memref<128x128xf32, #tpu.memory_space<vmem>>, vector<8x128xf32>
    %cst_57 = arith.constant dense<0.000000e+00> : vector<8x128xf32>
    %256 = tpu.matmul %251, %7, %cst_57 {dimension_numbers = #tpu.dot_dimension_numbers<[1], [0], [0], [1], [0, 0, 1, 1], [], []>} : vector<8x32xf32>, vector<32x128xf32>, vector<8x128xf32> -> vector<8x128xf32>
    %257 = arith.addf %255, %256 : vector<8x128xf32>
    %258 = vector.extract_strided_slice %257 {offsets = [0, 0], sizes = [8, 96], strides = [1, 1]} : vector<8x128xf32> to vector<8x96xf32>
    %259 = arith.negf %258 : vector<8x96xf32>
    %260 = math.exp %259 : vector<8x96xf32>
    %cst_58 = arith.constant 1.000000e+00 : f32
    %261 = vector.broadcast %cst_58 : f32 to vector<8x96xf32>
    %262 = arith.addf %261, %260 : vector<8x96xf32>
    %263 = arith.divf %261, %262 : vector<8x96xf32>
    %264 = vector.extract_strided_slice %257 {offsets = [0, 96], sizes = [8, 32], strides = [1, 1]} : vector<8x128xf32> to vector<8x32xf32>
    %265 = math.tanh %264 : vector<8x32xf32>
    %266 = vector.extract_strided_slice %263 {offsets = [0, 0], sizes = [8, 32], strides = [1, 1]} : vector<8x96xf32> to vector<8x32xf32>
    %267 = vector.extract_strided_slice %263 {offsets = [0, 32], sizes = [8, 32], strides = [1, 1]} : vector<8x96xf32> to vector<8x32xf32>
    %268 = vector.extract_strided_slice %263 {offsets = [0, 64], sizes = [8, 32], strides = [1, 1]} : vector<8x96xf32> to vector<8x32xf32>
    %269 = arith.mulf %267, %249 : vector<8x32xf32>
    %270 = arith.mulf %266, %265 : vector<8x32xf32>
    %271 = arith.addf %269, %270 : vector<8x32xf32>
    %272 = math.tanh %271 : vector<8x32xf32>
    %273 = arith.mulf %268, %272 : vector<8x32xf32>
    %c12_i32 = arith.constant 12 : i32
    %c8_i32_59 = arith.constant 8 : i32
    %274 = arith.muli %c12_i32, %c8_i32_59 : i32
    %275 = tpu.assume_multiple %274, 8 : i32
    %276 = arith.index_cast %275 : i32 to index
    %c0_60 = arith.constant 0 : index
    %277 = vector.load %arg5[%276, %c0_60] : memref<128x128xf32, #tpu.memory_space<vmem>>, vector<8x128xf32>
    %cst_61 = arith.constant dense<0.000000e+00> : vector<8x128xf32>
    %278 = tpu.matmul %273, %7, %cst_61 {dimension_numbers = #tpu.dot_dimension_numbers<[1], [0], [0], [1], [0, 0, 1, 1], [], []>} : vector<8x32xf32>, vector<32x128xf32>, vector<8x128xf32> -> vector<8x128xf32>
    %279 = arith.addf %277, %278 : vector<8x128xf32>
    %280 = vector.extract_strided_slice %279 {offsets = [0, 0], sizes = [8, 96], strides = [1, 1]} : vector<8x128xf32> to vector<8x96xf32>
    %281 = arith.negf %280 : vector<8x96xf32>
    %282 = math.exp %281 : vector<8x96xf32>
    %cst_62 = arith.constant 1.000000e+00 : f32
    %283 = vector.broadcast %cst_62 : f32 to vector<8x96xf32>
    %284 = arith.addf %283, %282 : vector<8x96xf32>
    %285 = arith.divf %283, %284 : vector<8x96xf32>
    %286 = vector.extract_strided_slice %279 {offsets = [0, 96], sizes = [8, 32], strides = [1, 1]} : vector<8x128xf32> to vector<8x32xf32>
    %287 = math.tanh %286 : vector<8x32xf32>
    %288 = vector.extract_strided_slice %285 {offsets = [0, 0], sizes = [8, 32], strides = [1, 1]} : vector<8x96xf32> to vector<8x32xf32>
    %289 = vector.extract_strided_slice %285 {offsets = [0, 32], sizes = [8, 32], strides = [1, 1]} : vector<8x96xf32> to vector<8x32xf32>
    %290 = vector.extract_strided_slice %285 {offsets = [0, 64], sizes = [8, 32], strides = [1, 1]} : vector<8x96xf32> to vector<8x32xf32>
    %291 = arith.mulf %289, %271 : vector<8x32xf32>
    %292 = arith.mulf %288, %287 : vector<8x32xf32>
    %293 = arith.addf %291, %292 : vector<8x32xf32>
    %294 = math.tanh %293 : vector<8x32xf32>
    %295 = arith.mulf %290, %294 : vector<8x32xf32>
    %c13_i32 = arith.constant 13 : i32
    %c8_i32_63 = arith.constant 8 : i32
    %296 = arith.muli %c13_i32, %c8_i32_63 : i32
    %297 = tpu.assume_multiple %296, 8 : i32
    %298 = arith.index_cast %297 : i32 to index
    %c0_64 = arith.constant 0 : index
    %299 = vector.load %arg5[%298, %c0_64] : memref<128x128xf32, #tpu.memory_space<vmem>>, vector<8x128xf32>
    %cst_65 = arith.constant dense<0.000000e+00> : vector<8x128xf32>
    %300 = tpu.matmul %295, %7, %cst_65 {dimension_numbers = #tpu.dot_dimension_numbers<[1], [0], [0], [1], [0, 0, 1, 1], [], []>} : vector<8x32xf32>, vector<32x128xf32>, vector<8x128xf32> -> vector<8x128xf32>
    %301 = arith.addf %299, %300 : vector<8x128xf32>
    %302 = vector.extract_strided_slice %301 {offsets = [0, 0], sizes = [8, 96], strides = [1, 1]} : vector<8x128xf32> to vector<8x96xf32>
    %303 = arith.negf %302 : vector<8x96xf32>
    %304 = math.exp %303 : vector<8x96xf32>
    %cst_66 = arith.constant 1.000000e+00 : f32
    %305 = vector.broadcast %cst_66 : f32 to vector<8x96xf32>
    %306 = arith.addf %305, %304 : vector<8x96xf32>
    %307 = arith.divf %305, %306 : vector<8x96xf32>
    %308 = vector.extract_strided_slice %301 {offsets = [0, 96], sizes = [8, 32], strides = [1, 1]} : vector<8x128xf32> to vector<8x32xf32>
    %309 = math.tanh %308 : vector<8x32xf32>
    %310 = vector.extract_strided_slice %307 {offsets = [0, 0], sizes = [8, 32], strides = [1, 1]} : vector<8x96xf32> to vector<8x32xf32>
    %311 = vector.extract_strided_slice %307 {offsets = [0, 32], sizes = [8, 32], strides = [1, 1]} : vector<8x96xf32> to vector<8x32xf32>
    %312 = vector.extract_strided_slice %307 {offsets = [0, 64], sizes = [8, 32], strides = [1, 1]} : vector<8x96xf32> to vector<8x32xf32>
    %313 = arith.mulf %311, %293 : vector<8x32xf32>
    %314 = arith.mulf %310, %309 : vector<8x32xf32>
    %315 = arith.addf %313, %314 : vector<8x32xf32>
    %316 = math.tanh %315 : vector<8x32xf32>
    %317 = arith.mulf %312, %316 : vector<8x32xf32>
    %c14_i32 = arith.constant 14 : i32
    %c8_i32_67 = arith.constant 8 : i32
    %318 = arith.muli %c14_i32, %c8_i32_67 : i32
    %319 = tpu.assume_multiple %318, 8 : i32
    %320 = arith.index_cast %319 : i32 to index
    %c0_68 = arith.constant 0 : index
    %321 = vector.load %arg5[%320, %c0_68] : memref<128x128xf32, #tpu.memory_space<vmem>>, vector<8x128xf32>
    %cst_69 = arith.constant dense<0.000000e+00> : vector<8x128xf32>
    %322 = tpu.matmul %317, %7, %cst_69 {dimension_numbers = #tpu.dot_dimension_numbers<[1], [0], [0], [1], [0, 0, 1, 1], [], []>} : vector<8x32xf32>, vector<32x128xf32>, vector<8x128xf32> -> vector<8x128xf32>
    %323 = arith.addf %321, %322 : vector<8x128xf32>
    %324 = vector.extract_strided_slice %323 {offsets = [0, 0], sizes = [8, 96], strides = [1, 1]} : vector<8x128xf32> to vector<8x96xf32>
    %325 = arith.negf %324 : vector<8x96xf32>
    %326 = math.exp %325 : vector<8x96xf32>
    %cst_70 = arith.constant 1.000000e+00 : f32
    %327 = vector.broadcast %cst_70 : f32 to vector<8x96xf32>
    %328 = arith.addf %327, %326 : vector<8x96xf32>
    %329 = arith.divf %327, %328 : vector<8x96xf32>
    %330 = vector.extract_strided_slice %323 {offsets = [0, 96], sizes = [8, 32], strides = [1, 1]} : vector<8x128xf32> to vector<8x32xf32>
    %331 = math.tanh %330 : vector<8x32xf32>
    %332 = vector.extract_strided_slice %329 {offsets = [0, 0], sizes = [8, 32], strides = [1, 1]} : vector<8x96xf32> to vector<8x32xf32>
    %333 = vector.extract_strided_slice %329 {offsets = [0, 32], sizes = [8, 32], strides = [1, 1]} : vector<8x96xf32> to vector<8x32xf32>
    %334 = vector.extract_strided_slice %329 {offsets = [0, 64], sizes = [8, 32], strides = [1, 1]} : vector<8x96xf32> to vector<8x32xf32>
    %335 = arith.mulf %333, %315 : vector<8x32xf32>
    %336 = arith.mulf %332, %331 : vector<8x32xf32>
    %337 = arith.addf %335, %336 : vector<8x32xf32>
    %338 = math.tanh %337 : vector<8x32xf32>
    %339 = arith.mulf %334, %338 : vector<8x32xf32>
    %c15_i32 = arith.constant 15 : i32
    %c8_i32_71 = arith.constant 8 : i32
    %340 = arith.muli %c15_i32, %c8_i32_71 : i32
    %341 = tpu.assume_multiple %340, 8 : i32
    %342 = arith.index_cast %341 : i32 to index
    %c0_72 = arith.constant 0 : index
    %343 = vector.load %arg5[%342, %c0_72] : memref<128x128xf32, #tpu.memory_space<vmem>>, vector<8x128xf32>
    %cst_73 = arith.constant dense<0.000000e+00> : vector<8x128xf32>
    %344 = tpu.matmul %339, %7, %cst_73 {dimension_numbers = #tpu.dot_dimension_numbers<[1], [0], [0], [1], [0, 0, 1, 1], [], []>} : vector<8x32xf32>, vector<32x128xf32>, vector<8x128xf32> -> vector<8x128xf32>
    %345 = arith.addf %343, %344 : vector<8x128xf32>
    %346 = vector.extract_strided_slice %345 {offsets = [0, 0], sizes = [8, 96], strides = [1, 1]} : vector<8x128xf32> to vector<8x96xf32>
    %347 = arith.negf %346 : vector<8x96xf32>
    %348 = math.exp %347 : vector<8x96xf32>
    %cst_74 = arith.constant 1.000000e+00 : f32
    %349 = vector.broadcast %cst_74 : f32 to vector<8x96xf32>
    %350 = arith.addf %349, %348 : vector<8x96xf32>
    %351 = arith.divf %349, %350 : vector<8x96xf32>
    %352 = vector.extract_strided_slice %345 {offsets = [0, 96], sizes = [8, 32], strides = [1, 1]} : vector<8x128xf32> to vector<8x32xf32>
    %353 = math.tanh %352 : vector<8x32xf32>
    %354 = vector.extract_strided_slice %351 {offsets = [0, 0], sizes = [8, 32], strides = [1, 1]} : vector<8x96xf32> to vector<8x32xf32>
    %355 = vector.extract_strided_slice %351 {offsets = [0, 32], sizes = [8, 32], strides = [1, 1]} : vector<8x96xf32> to vector<8x32xf32>
    %356 = vector.extract_strided_slice %351 {offsets = [0, 64], sizes = [8, 32], strides = [1, 1]} : vector<8x96xf32> to vector<8x32xf32>
    %357 = arith.mulf %355, %337 : vector<8x32xf32>
    %358 = arith.mulf %354, %353 : vector<8x32xf32>
    %359 = arith.addf %357, %358 : vector<8x32xf32>
    %360 = math.tanh %359 : vector<8x32xf32>
    %361 = arith.mulf %356, %360 : vector<8x32xf32>
    %c16_i32 = arith.constant 16 : i32
    %c0_75 = arith.constant 0 : index
    %c0_76 = arith.constant 0 : index
    %362 = vector.load %arg4[%c0_75, %c0_76] : memref<8x32xf32, #tpu.memory_space<vmem>>, vector<8x32xf32>
    tpu.vector_store %arg4[%c0_75, %c0_76], %361 {strides = array<i32>} : memref<8x32xf32, #tpu.memory_space<vmem>>, vector<8x32xf32>,
    return
  }
}

</mosaic_0001>

<llo_original>
// kernel: lstm_module_forward.1
$region0: #{lstm_module_forward.1}
  #allocation0 [shape = 'u32[]', space=smem, size = 0x4, offset = 0x4, fixed_abs, tag = 'smem constant byte address 0x4 - core index']
  #allocation1 [shape = 'u32[72,128]{1,0:T(1,128)}', space=vmem, size = 0x9000, scoped, tag = 'internal scratch']
  #allocation2 [shape = 'f32[128,128]{1,0:T(8,128)}', space=vmem, size = 0x10000, scoped, tag = 'scratch operand']
  %s0 = inlined_call_operand.vmem [shape: f32[128,64], index: 0, kind: input, shape index: {}]
  %s1 = inlined_call_operand.vmem [shape: f32[64,128], index: 1, kind: input, shape index: {}]
  %s2 = inlined_call_operand.vmem [shape: f32[32,128], index: 2, kind: input, shape index: {}]
  %s3 = inlined_call_operand.vmem [shape: f32[1,128], index: 3, kind: input, shape index: {}]
  %s4 = inlined_call_operand.vmem [shape: f32[8,32], index: 4, kind: output, shape index: {}]
  %s5 = sld [smem:[#allocation0]]
  $region26: #{lstm_module_forward.1} parent=0
    _
  %s7 = ssub.s32 1, %s5
  %s8 = scalar_select 0, %s7, %s5
  // Predicated region
  $region2: #{lstm_module_forward.1} parent=0 // pred_check
    _
  $region3: #{lstm_module_forward.1} parent=0 // pred_check_branch
    %10 = sbr.rel (0) target = $region5
  $region4: #{lstm_module_forward.1} parent=0 // pred_region
    _
  $region5: #{lstm_module_forward.1} parent=0 // pred_fallthru
    _
  // Predicated region
  $region6: #{lstm_module_forward.1} parent=0 // pred_check
    _
  $region7: #{lstm_module_forward.1} parent=0 // pred_check_branch
    %12 = sbr.rel (0) target = $region9
  $region8: #{lstm_module_forward.1} parent=0 // pred_region
    _
  $region9: #{lstm_module_forward.1} parent=0 // pred_fallthru
    _
  // Predicated region
  $region10: #{lstm_module_forward.1} parent=0 // pred_check
    _
  $region11: #{lstm_module_forward.1} parent=0 // pred_check_branch
    %14 = sbr.rel (0) target = $region13
  $region12: #{lstm_module_forward.1} parent=0 // pred_region
    _
  $region13: #{lstm_module_forward.1} parent=0 // pred_fallthru
    _
  // Predicated region
  $region14: #{lstm_module_forward.1} parent=0 // pred_check
    _
  $region15: #{lstm_module_forward.1} parent=0 // pred_check_branch
    %16 = sbr.rel (0) target = $region17
  $region16: #{lstm_module_forward.1} parent=0 // pred_region
    _
  $region17: #{lstm_module_forward.1} parent=0 // pred_fallthru
    _
  %v17 = vld [vmem:[%s0] sm:$0xff]
  %v18 = vld [vmem:[%s0 + $0x8] sm:$0xff]
  %v19 = vld [vmem:[%s0 + $0x10] sm:$0xff]
  %v20 = vld [vmem:[%s0 + $0x18] sm:$0xff]
  %v21 = vld [vmem:[%s0 + $0x20] sm:$0xff]
  %v22 = vld [vmem:[%s0 + $0x28] sm:$0xff]
  %v23 = vld [vmem:[%s0 + $0x30] sm:$0xff]
  %v24 = vld [vmem:[%s0 + $0x38] sm:$0xff]
  %v25 = vld [vmem:[%s0 + $0x40] sm:$0xff]
  %v26 = vld [vmem:[%s0 + $0x48] sm:$0xff]
  %v27 = vld [vmem:[%s0 + $0x50] sm:$0xff]
  %v28 = vld [vmem:[%s0 + $0x58] sm:$0xff]
  %v29 = vld [vmem:[%s0 + $0x60] sm:$0xff]
  %v30 = vld [vmem:[%s0 + $0x68] sm:$0xff]
  %v31 = vld [vmem:[%s0 + $0x70] sm:$0xff]
  %v32 = vld [vmem:[%s0 + $0x78] sm:$0xff]
  %v33 = vld [vmem:[%s1] sm:$0xff]
  %v34 = vld [vmem:[%s1 + $0x8] sm:$0xff]
  %v35 = vld [vmem:[%s1 + $0x10] sm:$0xff]
  %v36 = vld [vmem:[%s1 + $0x18] sm:$0xff]
  %v37 = vld [vmem:[%s1 + $0x20] sm:$0xff]
  %v38 = vld [vmem:[%s1 + $0x28] sm:$0xff]
  %v39 = vld [vmem:[%s1 + $0x30] sm:$0xff]
  %v40 = vld [vmem:[%s1 + $0x38] sm:$0xff]
  %v41 = vld [vmem:[%s3] sm:$0x1]
  %v43 = vperm.slane %v41, 0
  %vm45 = vcmask 523264
  %v47 = vsel %vm45, %v17, 0
  %v50 = vsel %vm45, %v18, 0
  %v53 = vsel %vm45, %v19, 0
  %v56 = vsel %vm45, %v20, 0
  %v59 = vsel %vm45, %v21, 0
  %v62 = vsel %vm45, %v22, 0
  %v65 = vsel %vm45, %v23, 0
  %v68 = vsel %vm45, %v24, 0
  %v71 = vsel %vm45, %v25, 0
  %v74 = vsel %vm45, %v26, 0
  %v77 = vsel %vm45, %v27, 0
  %v80 = vsel %vm45, %v28, 0
  %v83 = vsel %vm45, %v29, 0
  %v86 = vsel %vm45, %v30, 0
  %v89 = vsel %vm45, %v31, 0
  %v92 = vsel %vm45, %v32, 0
  %94 = vmatpush.msra.mxu0 0.0
  %95 = vmatpush.msra.mxu0 0.0
  %96 = vmatpush.msra.mxu0 0.0
  %97 = vmatpush.msra.mxu0 0.0
  %98 = vmatpush.msra.mxu0 0.0
  %99 = vmatpush.msra.mxu0 0.0
  %100 = vmatpush.msra.mxu0 0.0
  %101 = vmatpush.msra.mxu0 0.0
  %102 = vmatpush.msra.mxu0 %v40
  %103 = vmatpush.msra.mxu0 %v39
  %104 = vmatpush.msra.mxu0 %v38
  %105 = vmatpush.msra.mxu0 %v37
  %106 = vmatpush.msra.mxu0 %v36
  %107 = vmatpush.msra.mxu0 %v35
  %108 = vmatpush.msra.mxu0 %v34
  %109 = vmatpush.msra.mxu0 %v33
  %110 = vmatmul.f32.gmra.mxu0 %v47
  %v111 = vpop.f32.mrf.mxu0
  %v112 = vadd.f32 %v43, %v111
  %113 = vmatmul.f32.gmra.mxu0 %v50
  %v114 = vpop.f32.mrf.mxu0
  %v115 = vadd.f32 %v43, %v114
  %116 = vmatmul.f32.gmra.mxu0 %v53
  %v117 = vpop.f32.mrf.mxu0
  %v118 = vadd.f32 %v43, %v117
  %119 = vmatmul.f32.gmra.mxu0 %v56
  %v120 = vpop.f32.mrf.mxu0
  %v121 = vadd.f32 %v43, %v120
  %122 = vmatmul.f32.gmra.mxu0 %v59
  %v123 = vpop.f32.mrf.mxu0
  %v124 = vadd.f32 %v43, %v123
  %125 = vmatmul.f32.gmra.mxu0 %v62
  %v126 = vpop.f32.mrf.mxu0
  %v127 = vadd.f32 %v43, %v126
  %128 = vmatmul.f32.gmra.mxu0 %v65
  %v129 = vpop.f32.mrf.mxu0
  %v130 = vadd.f32 %v43, %v129
  %131 = vmatmul.f32.gmra.mxu0 %v68
  %v132 = vpop.f32.mrf.mxu0
  %v133 = vadd.f32 %v43, %v132
  %134 = vmatmul.f32.gmra.mxu0 %v71
  %v135 = vpop.f32.mrf.mxu0
  %v136 = vadd.f32 %v43, %v135
  %137 = vmatmul.f32.gmra.mxu0 %v74
  %v138 = vpop.f32.mrf.mxu0
  %v139 = vadd.f32 %v43, %v138
  %140 = vmatmul.f32.gmra.mxu0 %v77
  %v141 = vpop.f32.mrf.mxu0
  %v142 = vadd.f32 %v43, %v141
  %143 = vmatmul.f32.gmra.mxu0 %v80
  %v144 = vpop.f32.mrf.mxu0
  %v145 = vadd.f32 %v43, %v144
  %146 = vmatmul.f32.gmra.mxu0 %v83
  %v147 = vpop.f32.mrf.mxu0
  %v148 = vadd.f32 %v43, %v147
  %149 = vmatmul.f32.gmra.mxu0 %v86
  %v150 = vpop.f32.mrf.mxu0
  %v151 = vadd.f32 %v43, %v150
  %152 = vmatmul.f32.gmra.mxu0 %v89
  %v153 = vpop.f32.mrf.mxu0
  %v154 = vadd.f32 %v43, %v153
  %155 = vmatmul.f32.gmra.mxu0 %v92
  %v156 = vpop.f32.mrf.mxu0
  %v157 = vadd.f32 %v43, %v156
  %158 = vdwg.mxu0
  %159 = vst [vmem:[#allocation2] sm:$0xff] %v112
  %160 = vst [vmem:[#allocation2 + $0x8] sm:$0xff] %v115
  %161 = vst [vmem:[#allocation2 + $0x10] sm:$0xff] %v118
  %162 = vst [vmem:[#allocation2 + $0x18] sm:$0xff] %v121
  %163 = vst [vmem:[#allocation2 + $0x20] sm:$0xff] %v124
  %164 = vst [vmem:[#allocation2 + $0x28] sm:$0xff] %v127
  %165 = vst [vmem:[#allocation2 + $0x30] sm:$0xff] %v130
  %166 = vst [vmem:[#allocation2 + $0x38] sm:$0xff] %v133
  %167 = vst [vmem:[#allocation2 + $0x40] sm:$0xff] %v136
  %168 = vst [vmem:[#allocation2 + $0x48] sm:$0xff] %v139
  %169 = vst [vmem:[#allocation2 + $0x50] sm:$0xff] %v142
  %170 = vst [vmem:[#allocation2 + $0x58] sm:$0xff] %v145
  %171 = vst [vmem:[#allocation2 + $0x60] sm:$0xff] %v148
  %172 = vst [vmem:[#allocation2 + $0x68] sm:$0xff] %v151
  %173 = vst [vmem:[#allocation2 + $0x70] sm:$0xff] %v154
  %174 = vst [vmem:[#allocation2 + $0x78] sm:$0xff] %v157
  %v175 = vld [vmem:[%s2] sm:$0xff]
  %v176 = vld [vmem:[%s2 + $0x8] sm:$0xff]
  %v177 = vld [vmem:[%s2 + $0x10] sm:$0xff]
  %v178 = vld [vmem:[%s2 + $0x18] sm:$0xff]
  %v179 = vld [vmem:[#allocation2] sm:$0xff]
  %vm180 = vcmask 261120
  %v182 = vsel %vm180, 0.0, 0
  %184 = vmatpush.msra.mxu0 0.0
  %185 = vmatpush.msra.mxu0 0.0
  %186 = vmatpush.msra.mxu0 0.0
  %187 = vmatpush.msra.mxu0 0.0
  %188 = vmatpush.msra.mxu0 0.0
  %189 = vmatpush.msra.mxu0 0.0
  %190 = vmatpush.msra.mxu0 0.0
  %191 = vmatpush.msra.mxu0 0.0
  %192 = vmatpush.msra.mxu0 0.0
  %193 = vmatpush.msra.mxu0 0.0
  %194 = vmatpush.msra.mxu0 0.0
  %195 = vmatpush.msra.mxu0 0.0
  %196 = vmatpush.msra.mxu0 %v178
  %197 = vmatpush.msra.mxu0 %v177
  %198 = vmatpush.msra.mxu0 %v176
  %199 = vmatpush.msra.mxu0 %v175
  %200 = vmatmul.f32.gmra.mxu0 %v182
  %v201 = vpop.f32.mrf.mxu0
  %v202 = vadd.f32 0.0, %v201
  %203 = vdwg.mxu0
  %v204 = vadd.f32 %v179, %v202
  %v205 = vxor.u32 %v204, 2147483648
  %v206 = vmul.f32 %v205, 1.442695
  %v207 = vpow.pop %v206
  %v208 = vadd.f32 %v207, 1.0
  %v209 = vrcp.pop %v208
  %v210 = vmul.f32 %v208, %v209
  %v211 = vsub.f32 1.0, %v210
  %v212 = vmul.f32 %v209, %v211
  %v213 = vadd.f32 %v209, %v212
  %vm214 = vweird.f32 %v208
  %vm215 = vweird.f32 %v209
  %vm216 = vmor %vm214, %vm215
  %v217 = vsel %vm216, %v209, %v213
  %v218 = vand.u32 2147483647, %v208
  %vm219 = vcmp.eq.f32.partialorder %v218, 8.507059e+37
  %v220 = vand.u32 %v208, 2147483648
  %v221 = vor.u32 1.1754944e-38, %v220
  %v222 = vsel %vm219, %v221, %v217
  %v223 = vmul.f32 1.0, %v222
  %v224 = vtanh.pop %v204
  %v225 = vmul.f32 %v223, 0.0
  %227 = vrot.lane.b32.xlu0 %v224, 32
  %v228 = vpop.permute.xlu0 %227
  %v230 = vmul.f32 %v223, %v228
  %232 = vrot.lane.b32.xlu0 %v230, 32
  %v233 = vpop.permute.xlu0 %232
  %v235 = vadd.f32 %v225, %v233
  %v236 = vtanh.pop %v235
  %238 = vrot.lane.b32.xlu0 %v236, 32
  %v239 = vpop.permute.xlu0 %238
  %v241 = vmul.f32 %v223, %v239
  %s242 = scalar_lea.vmem [#allocation2], 8
  %v243 = vld [vmem:[%s242] sm:$0xff]
  %245 = vrot.lane.b32.xlu0 %v241, 64
  %v246 = vpop.permute.xlu0 %245
  %v247 = vsel %vm180, %v246, 0
  %249 = vmatpush.msra.mxu0 0.0
  %250 = vmatpush.msra.mxu0 0.0
  %251 = vmatpush.msra.mxu0 0.0
  %252 = vmatpush.msra.mxu0 0.0
  %253 = vmatpush.msra.mxu0 0.0
  %254 = vmatpush.msra.mxu0 0.0
  %255 = vmatpush.msra.mxu0 0.0
  %256 = vmatpush.msra.mxu0 0.0
  %257 = vmatpush.msra.mxu0 0.0
  %258 = vmatpush.msra.mxu0 0.0
  %259 = vmatpush.msra.mxu0 0.0
  %260 = vmatpush.msra.mxu0 0.0
  %261 = vmatpush.msra.mxu0 %v178
  %262 = vmatpush.msra.mxu0 %v177
  %263 = vmatpush.msra.mxu0 %v176
  %264 = vmatpush.msra.mxu0 %v175
  %265 = vmatmul.f32.gmra.mxu0 %v247
  %v266 = vpop.f32.mrf.mxu0
  %v267 = vadd.f32 0.0, %v266
  %268 = vdwg.mxu0
  %v269 = vadd.f32 %v243, %v267
  %v270 = vxor.u32 %v269, 2147483648
  %v271 = vmul.f32 %v270, 1.442695
  %v272 = vpow.pop %v271
  %v273 = vadd.f32 %v272, 1.0
  %v274 = vrcp.pop %v273
  %v275 = vmul.f32 %v273, %v274
  %v276 = vsub.f32 1.0, %v275
  %v277 = vmul.f32 %v274, %v276
  %v278 = vadd.f32 %v274, %v277
  %vm279 = vweird.f32 %v273
  %vm280 = vweird.f32 %v274
  %vm281 = vmor %vm279, %vm280
  %v282 = vsel %vm281, %v274, %v278
  %v283 = vand.u32 2147483647, %v273
  %vm284 = vcmp.eq.f32.partialorder %v283, 8.507059e+37
  %v285 = vand.u32 %v273, 2147483648
  %v286 = vor.u32 1.1754944e-38, %v285
  %v287 = vsel %vm284, %v286, %v282
  %v288 = vmul.f32 1.0, %v287
  %v289 = vtanh.pop %v269
  %v290 = vmul.f32 %v288, %v235
  %292 = vrot.lane.b32.xlu0 %v289, 32
  %v293 = vpop.permute.xlu0 %292
  %v295 = vmul.f32 %v288, %v293
  %297 = vrot.lane.b32.xlu0 %v295, 32
  %v298 = vpop.permute.xlu0 %297
  %v300 = vadd.f32 %v290, %v298
  %v301 = vtanh.pop %v300
  %303 = vrot.lane.b32.xlu0 %v301, 32
  %v304 = vpop.permute.xlu0 %303
  %v306 = vmul.f32 %v288, %v304
  %s307 = scalar_lea.vmem [#allocation2], 16
  %v308 = vld [vmem:[%s307] sm:$0xff]
  %310 = vrot.lane.b32.xlu0 %v306, 64
  %v311 = vpop.permute.xlu0 %310
  %v312 = vsel %vm180, %v311, 0
  %314 = vmatpush.msra.mxu0 0.0
  %315 = vmatpush.msra.mxu0 0.0
  %316 = vmatpush.msra.mxu0 0.0
  %317 = vmatpush.msra.mxu0 0.0
  %318 = vmatpush.msra.mxu0 0.0
  %319 = vmatpush.msra.mxu0 0.0
  %320 = vmatpush.msra.mxu0 0.0
  %321 = vmatpush.msra.mxu0 0.0
  %322 = vmatpush.msra.mxu0 0.0
  %323 = vmatpush.msra.mxu0 0.0
  %324 = vmatpush.msra.mxu0 0.0
  %325 = vmatpush.msra.mxu0 0.0
  %326 = vmatpush.msra.mxu0 %v178
  %327 = vmatpush.msra.mxu0 %v177
  %328 = vmatpush.msra.mxu0 %v176
  %329 = vmatpush.msra.mxu0 %v175
  %330 = vmatmul.f32.gmra.mxu0 %v312
  %v331 = vpop.f32.mrf.mxu0
  %v332 = vadd.f32 0.0, %v331
  %333 = vdwg.mxu0
  %v334 = vadd.f32 %v308, %v332
  %v335 = vxor.u32 %v334, 2147483648
  %v336 = vmul.f32 %v335, 1.442695
  %v337 = vpow.pop %v336
  %v338 = vadd.f32 %v337, 1.0
  %v339 = vrcp.pop %v338
  %v340 = vmul.f32 %v338, %v339
  %v341 = vsub.f32 1.0, %v340
  %v342 = vmul.f32 %v339, %v341
  %v343 = vadd.f32 %v339, %v342
  %vm344 = vweird.f32 %v338
  %vm345 = vweird.f32 %v339
  %vm346 = vmor %vm344, %vm345
  %v347 = vsel %vm346, %v339, %v343
  %v348 = vand.u32 2147483647, %v338
  %vm349 = vcmp.eq.f32.partialorder %v348, 8.507059e+37
  %v350 = vand.u32 %v338, 2147483648
  %v351 = vor.u32 1.1754944e-38, %v350
  %v352 = vsel %vm349, %v351, %v347
  %v353 = vmul.f32 1.0, %v352
  %v354 = vtanh.pop %v334
  %v355 = vmul.f32 %v353, %v300
  %357 = vrot.lane.b32.xlu0 %v354, 32
  %v358 = vpop.permute.xlu0 %357
  %v360 = vmul.f32 %v353, %v358
  %362 = vrot.lane.b32.xlu0 %v360, 32
  %v363 = vpop.permute.xlu0 %362
  %v365 = vadd.f32 %v355, %v363
  %v366 = vtanh.pop %v365
  %368 = vrot.lane.b32.xlu0 %v366, 32
  %v369 = vpop.permute.xlu0 %368
  %v371 = vmul.f32 %v353, %v369
  %s372 = scalar_lea.vmem [#allocation2], 24
  %v373 = vld [vmem:[%s372] sm:$0xff]
  %375 = vrot.lane.b32.xlu0 %v371, 64
  %v376 = vpop.permute.xlu0 %375
  %v377 = vsel %vm180, %v376, 0
  %379 = vmatpush.msra.mxu0 0.0
  %380 = vmatpush.msra.mxu0 0.0
  %381 = vmatpush.msra.mxu0 0.0
  %382 = vmatpush.msra.mxu0 0.0
  %383 = vmatpush.msra.mxu0 0.0
  %384 = vmatpush.msra.mxu0 0.0
  %385 = vmatpush.msra.mxu0 0.0
  %386 = vmatpush.msra.mxu0 0.0
  %387 = vmatpush.msra.mxu0 0.0
  %388 = vmatpush.msra.mxu0 0.0
  %389 = vmatpush.msra.mxu0 0.0
  %390 = vmatpush.msra.mxu0 0.0
  %391 = vmatpush.msra.mxu0 %v178
  %392 = vmatpush.msra.mxu0 %v177
  %393 = vmatpush.msra.mxu0 %v176
  %394 = vmatpush.msra.mxu0 %v175
  %395 = vmatmul.f32.gmra.mxu0 %v377
  %v396 = vpop.f32.mrf.mxu0
  %v397 = vadd.f32 0.0, %v396
  %398 = vdwg.mxu0
  %v399 = vadd.f32 %v373, %v397
  %v400 = vxor.u32 %v399, 2147483648
  %v401 = vmul.f32 %v400, 1.442695
  %v402 = vpow.pop %v401
  %v403 = vadd.f32 %v402, 1.0
  %v404 = vrcp.pop %v403
  %v405 = vmul.f32 %v403, %v404
  %v406 = vsub.f32 1.0, %v405
  %v407 = vmul.f32 %v404, %v406
  %v408 = vadd.f32 %v404, %v407
  %vm409 = vweird.f32 %v403
  %vm410 = vweird.f32 %v404
  %vm411 = vmor %vm409, %vm410
  %v412 = vsel %vm411, %v404, %v408
  %v413 = vand.u32 2147483647, %v403
  %vm414 = vcmp.eq.f32.partialorder %v413, 8.507059e+37
  %v415 = vand.u32 %v403, 2147483648
  %v416 = vor.u32 1.1754944e-38, %v415
  %v417 = vsel %vm414, %v416, %v412
  %v418 = vmul.f32 1.0, %v417
  %v419 = vtanh.pop %v399
  %v420 = vmul.f32 %v418, %v365
  %422 = vrot.lane.b32.xlu0 %v419, 32
  %v423 = vpop.permute.xlu0 %422
  %v425 = vmul.f32 %v418, %v423
  %427 = vrot.lane.b32.xlu0 %v425, 32
  %v428 = vpop.permute.xlu0 %427
  %v430 = vadd.f32 %v420, %v428
  %v431 = vtanh.pop %v430
  %433 = vrot.lane.b32.xlu0 %v431, 32
  %v434 = vpop.permute.xlu0 %433
  %v436 = vmul.f32 %v418, %v434
  %s437 = scalar_lea.vmem [#allocation2], 32
  %v438 = vld [vmem:[%s437] sm:$0xff]
  %440 = vrot.lane.b32.xlu0 %v436, 64
  %v441 = vpop.permute.xlu0 %440
  %v442 = vsel %vm180, %v441, 0
  %444 = vmatpush.msra.mxu0 0.0
  %445 = vmatpush.msra.mxu0 0.0
  %446 = vmatpush.msra.mxu0 0.0
  %447 = vmatpush.msra.mxu0 0.0
  %448 = vmatpush.msra.mxu0 0.0
  %449 = vmatpush.msra.mxu0 0.0
  %450 = vmatpush.msra.mxu0 0.0
  %451 = vmatpush.msra.mxu0 0.0
  %452 = vmatpush.msra.mxu0 0.0
  %453 = vmatpush.msra.mxu0 0.0
  %454 = vmatpush.msra.mxu0 0.0
  %455 = vmatpush.msra.mxu0 0.0
  %456 = vmatpush.msra.mxu0 %v178
  %457 = vmatpush.msra.mxu0 %v177
  %458 = vmatpush.msra.mxu0 %v176
  %459 = vmatpush.msra.mxu0 %v175
  %460 = vmatmul.f32.gmra.mxu0 %v442
  %v461 = vpop.f32.mrf.mxu0
  %v462 = vadd.f32 0.0, %v461
  %463 = vdwg.mxu0
  %v464 = vadd.f32 %v438, %v462
  %v465 = vxor.u32 %v464, 2147483648
  %v466 = vmul.f32 %v465, 1.442695
  %v467 = vpow.pop %v466
  %v468 = vadd.f32 %v467, 1.0
  %v469 = vrcp.pop %v468
  %v470 = vmul.f32 %v468, %v469
  %v471 = vsub.f32 1.0, %v470
  %v472 = vmul.f32 %v469, %v471
  %v473 = vadd.f32 %v469, %v472
  %vm474 = vweird.f32 %v468
  %vm475 = vweird.f32 %v469
  %vm476 = vmor %vm474, %vm475
  %v477 = vsel %vm476, %v469, %v473
  %v478 = vand.u32 2147483647, %v468
  %vm479 = vcmp.eq.f32.partialorder %v478, 8.507059e+37
  %v480 = vand.u32 %v468, 2147483648
  %v481 = vor.u32 1.1754944e-38, %v480
  %v482 = vsel %vm479, %v481, %v477
  %v483 = vmul.f32 1.0, %v482
  %v484 = vtanh.pop %v464
  %v485 = vmul.f32 %v483, %v430
  %487 = vrot.lane.b32.xlu0 %v484, 32
  %v488 = vpop.permute.xlu0 %487
  %v490 = vmul.f32 %v483, %v488
  %492 = vrot.lane.b32.xlu0 %v490, 32
  %v493 = vpop.permute.xlu0 %492
  %v495 = vadd.f32 %v485, %v493
  %v496 = vtanh.pop %v495
  %498 = vrot.lane.b32.xlu0 %v496, 32
  %v499 = vpop.permute.xlu0 %498
  %v501 = vmul.f32 %v483, %v499
  %s502 = scalar_lea.vmem [#allocation2], 40
  %v503 = vld [vmem:[%s502] sm:$0xff]
  %505 = vrot.lane.b32.xlu0 %v501, 64
  %v506 = vpop.permute.xlu0 %505
  %v507 = vsel %vm180, %v506, 0
  %509 = vmatpush.msra.mxu0 0.0
  %510 = vmatpush.msra.mxu0 0.0
  %511 = vmatpush.msra.mxu0 0.0
  %512 = vmatpush.msra.mxu0 0.0
  %513 = vmatpush.msra.mxu0 0.0
  %514 = vmatpush.msra.mxu0 0.0
  %515 = vmatpush.msra.mxu0 0.0
  %516 = vmatpush.msra.mxu0 0.0
  %517 = vmatpush.msra.mxu0 0.0
  %518 = vmatpush.msra.mxu0 0.0
  %519 = vmatpush.msra.mxu0 0.0
  %520 = vmatpush.msra.mxu0 0.0
  %521 = vmatpush.msra.mxu0 %v178
  %522 = vmatpush.msra.mxu0 %v177
  %523 = vmatpush.msra.mxu0 %v176
  %524 = vmatpush.msra.mxu0 %v175
  %525 = vmatmul.f32.gmra.mxu0 %v507
  %v526 = vpop.f32.mrf.mxu0
  %v527 = vadd.f32 0.0, %v526
  %528 = vdwg.mxu0
  %v529 = vadd.f32 %v503, %v527
  %v530 = vxor.u32 %v529, 2147483648
  %v531 = vmul.f32 %v530, 1.442695
  %v532 = vpow.pop %v531
  %v533 = vadd.f32 %v532, 1.0
  %v534 = vrcp.pop %v533
  %v535 = vmul.f32 %v533, %v534
  %v536 = vsub.f32 1.0, %v535
  %v537 = vmul.f32 %v534, %v536
  %v538 = vadd.f32 %v534, %v537
  %vm539 = vweird.f32 %v533
  %vm540 = vweird.f32 %v534
  %vm541 = vmor %vm539, %vm540
  %v542 = vsel %vm541, %v534, %v538
  %v543 = vand.u32 2147483647, %v533
  %vm544 = vcmp.eq.f32.partialorder %v543, 8.507059e+37
  %v545 = vand.u32 %v533, 2147483648
  %v546 = vor.u32 1.1754944e-38, %v545
  %v547 = vsel %vm544, %v546, %v542
  %v548 = vmul.f32 1.0, %v547
  %v549 = vtanh.pop %v529
  %v550 = vmul.f32 %v548, %v495
  %552 = vrot.lane.b32.xlu0 %v549, 32
  %v553 = vpop.permute.xlu0 %552
  %v555 = vmul.f32 %v548, %v553
  %557 = vrot.lane.b32.xlu0 %v555, 32
  %v558 = vpop.permute.xlu0 %557
  %v560 = vadd.f32 %v550, %v558
  %v561 = vtanh.pop %v560
  %563 = vrot.lane.b32.xlu0 %v561, 32
  %v564 = vpop.permute.xlu0 %563
  %v566 = vmul.f32 %v548, %v564
  %s567 = scalar_lea.vmem [#allocation2], 48
  %v568 = vld [vmem:[%s567] sm:$0xff]
  %570 = vrot.lane.b32.xlu0 %v566, 64
  %v571 = vpop.permute.xlu0 %570
  %v572 = vsel %vm180, %v571, 0
  %574 = vmatpush.msra.mxu0 0.0
  %575 = vmatpush.msra.mxu0 0.0
  %576 = vmatpush.msra.mxu0 0.0
  %577 = vmatpush.msra.mxu0 0.0
  %578 = vmatpush.msra.mxu0 0.0
  %579 = vmatpush.msra.mxu0 0.0
  %580 = vmatpush.msra.mxu0 0.0
  %581 = vmatpush.msra.mxu0 0.0
  %582 = vmatpush.msra.mxu0 0.0
  %583 = vmatpush.msra.mxu0 0.0
  %584 = vmatpush.msra.mxu0 0.0
  %585 = vmatpush.msra.mxu0 0.0
  %586 = vmatpush.msra.mxu0 %v178
  %587 = vmatpush.msra.mxu0 %v177
  %588 = vmatpush.msra.mxu0 %v176
  %589 = vmatpush.msra.mxu0 %v175
  %590 = vmatmul.f32.gmra.mxu0 %v572
  %v591 = vpop.f32.mrf.mxu0
  %v592 = vadd.f32 0.0, %v591
  %593 = vdwg.mxu0
  %v594 = vadd.f32 %v568, %v592
  %v595 = vxor.u32 %v594, 2147483648
  %v596 = vmul.f32 %v595, 1.442695
  %v597 = vpow.pop %v596
  %v598 = vadd.f32 %v597, 1.0
  %v599 = vrcp.pop %v598
  %v600 = vmul.f32 %v598, %v599
  %v601 = vsub.f32 1.0, %v600
  %v602 = vmul.f32 %v599, %v601
  %v603 = vadd.f32 %v599, %v602
  %vm604 = vweird.f32 %v598
  %vm605 = vweird.f32 %v599
  %vm606 = vmor %vm604, %vm605
  %v607 = vsel %vm606, %v599, %v603
  %v608 = vand.u32 2147483647, %v598
  %vm609 = vcmp.eq.f32.partialorder %v608, 8.507059e+37
  %v610 = vand.u32 %v598, 2147483648
  %v611 = vor.u32 1.1754944e-38, %v610
  %v612 = vsel %vm609, %v611, %v607
  %v613 = vmul.f32 1.0, %v612
  %v614 = vtanh.pop %v594
  %v615 = vmul.f32 %v613, %v560
  %617 = vrot.lane.b32.xlu0 %v614, 32
  %v618 = vpop.permute.xlu0 %617
  %v620 = vmul.f32 %v613, %v618
  %622 = vrot.lane.b32.xlu0 %v620, 32
  %v623 = vpop.permute.xlu0 %622
  %v625 = vadd.f32 %v615, %v623
  %v626 = vtanh.pop %v625
  %628 = vrot.lane.b32.xlu0 %v626, 32
  %v629 = vpop.permute.xlu0 %628
  %v631 = vmul.f32 %v613, %v629
  %s632 = scalar_lea.vmem [#allocation2], 56
  %v633 = vld [vmem:[%s632] sm:$0xff]
  %635 = vrot.lane.b32.xlu0 %v631, 64
  %v636 = vpop.permute.xlu0 %635
  %v637 = vsel %vm180, %v636, 0
  %639 = vmatpush.msra.mxu0 0.0
  %640 = vmatpush.msra.mxu0 0.0
  %641 = vmatpush.msra.mxu0 0.0
  %642 = vmatpush.msra.mxu0 0.0
  %643 = vmatpush.msra.mxu0 0.0
  %644 = vmatpush.msra.mxu0 0.0
  %645 = vmatpush.msra.mxu0 0.0
  %646 = vmatpush.msra.mxu0 0.0
  %647 = vmatpush.msra.mxu0 0.0
  %648 = vmatpush.msra.mxu0 0.0
  %649 = vmatpush.msra.mxu0 0.0
  %650 = vmatpush.msra.mxu0 0.0
  %651 = vmatpush.msra.mxu0 %v178
  %652 = vmatpush.msra.mxu0 %v177
  %653 = vmatpush.msra.mxu0 %v176
  %654 = vmatpush.msra.mxu0 %v175
  %655 = vmatmul.f32.gmra.mxu0 %v637
  %v656 = vpop.f32.mrf.mxu0
  %v657 = vadd.f32 0.0, %v656
  %658 = vdwg.mxu0
  %v659 = vadd.f32 %v633, %v657
  %v660 = vxor.u32 %v659, 2147483648
  %v661 = vmul.f32 %v660, 1.442695
  %v662 = vpow.pop %v661
  %v663 = vadd.f32 %v662, 1.0
  %v664 = vrcp.pop %v663
  %v665 = vmul.f32 %v663, %v664
  %v666 = vsub.f32 1.0, %v665
  %v667 = vmul.f32 %v664, %v666
  %v668 = vadd.f32 %v664, %v667
  %vm669 = vweird.f32 %v663
  %vm670 = vweird.f32 %v664
  %vm671 = vmor %vm669, %vm670
  %v672 = vsel %vm671, %v664, %v668
  %v673 = vand.u32 2147483647, %v663
  %vm674 = vcmp.eq.f32.partialorder %v673, 8.507059e+37
  %v675 = vand.u32 %v663, 2147483648
  %v676 = vor.u32 1.1754944e-38, %v675
  %v677 = vsel %vm674, %v676, %v672
  %v678 = vmul.f32 1.0, %v677
  %v679 = vtanh.pop %v659
  %v680 = vmul.f32 %v678, %v625
  %682 = vrot.lane.b32.xlu0 %v679, 32
  %v683 = vpop.permute.xlu0 %682
  %v685 = vmul.f32 %v678, %v683
  %687 = vrot.lane.b32.xlu0 %v685, 32
  %v688 = vpop.permute.xlu0 %687
  %v690 = vadd.f32 %v680, %v688
  %v691 = vtanh.pop %v690
  %693 = vrot.lane.b32.xlu0 %v691, 32
  %v694 = vpop.permute.xlu0 %693
  %v696 = vmul.f32 %v678, %v694
  %s697 = scalar_lea.vmem [#allocation2], 64
  %v698 = vld [vmem:[%s697] sm:$0xff]
  %700 = vrot.lane.b32.xlu0 %v696, 64
  %v701 = vpop.permute.xlu0 %700
  %v702 = vsel %vm180, %v701, 0
  %704 = vmatpush.msra.mxu0 0.0
  %705 = vmatpush.msra.mxu0 0.0
  %706 = vmatpush.msra.mxu0 0.0
  %707 = vmatpush.msra.mxu0 0.0
  %708 = vmatpush.msra.mxu0 0.0
  %709 = vmatpush.msra.mxu0 0.0
  %710 = vmatpush.msra.mxu0 0.0
  %711 = vmatpush.msra.mxu0 0.0
  %712 = vmatpush.msra.mxu0 0.0
  %713 = vmatpush.msra.mxu0 0.0
  %714 = vmatpush.msra.mxu0 0.0
  %715 = vmatpush.msra.mxu0 0.0
  %716 = vmatpush.msra.mxu0 %v178
  %717 = vmatpush.msra.mxu0 %v177
  %718 = vmatpush.msra.mxu0 %v176
  %719 = vmatpush.msra.mxu0 %v175
  %720 = vmatmul.f32.gmra.mxu0 %v702
  %v721 = vpop.f32.mrf.mxu0
  %v722 = vadd.f32 0.0, %v721
  %723 = vdwg.mxu0
  %v724 = vadd.f32 %v698, %v722
  %v725 = vxor.u32 %v724, 2147483648
  %v726 = vmul.f32 %v725, 1.442695
  %v727 = vpow.pop %v726
  %v728 = vadd.f32 %v727, 1.0
  %v729 = vrcp.pop %v728
  %v730 = vmul.f32 %v728, %v729
  %v731 = vsub.f32 1.0, %v730
  %v732 = vmul.f32 %v729, %v731
  %v733 = vadd.f32 %v729, %v732
  %vm734 = vweird.f32 %v728
  %vm735 = vweird.f32 %v729
  %vm736 = vmor %vm734, %vm735
  %v737 = vsel %vm736, %v729, %v733
  %v738 = vand.u32 2147483647, %v728
  %vm739 = vcmp.eq.f32.partialorder %v738, 8.507059e+37
  %v740 = vand.u32 %v728, 2147483648
  %v741 = vor.u32 1.1754944e-38, %v740
  %v742 = vsel %vm739, %v741, %v737
  %v743 = vmul.f32 1.0, %v742
  %v744 = vtanh.pop %v724
  %v745 = vmul.f32 %v743, %v690
  %747 = vrot.lane.b32.xlu0 %v744, 32
  %v748 = vpop.permute.xlu0 %747
  %v750 = vmul.f32 %v743, %v748
  %752 = vrot.lane.b32.xlu0 %v750, 32
  %v753 = vpop.permute.xlu0 %752
  %v755 = vadd.f32 %v745, %v753
  %v756 = vtanh.pop %v755
  %758 = vrot.lane.b32.xlu0 %v756, 32
  %v759 = vpop.permute.xlu0 %758
  %v761 = vmul.f32 %v743, %v759
  %s762 = scalar_lea.vmem [#allocation2], 72
  %v763 = vld [vmem:[%s762] sm:$0xff]
  %765 = vrot.lane.b32.xlu0 %v761, 64
  %v766 = vpop.permute.xlu0 %765
  %v767 = vsel %vm180, %v766, 0
  %769 = vmatpush.msra.mxu0 0.0
  %770 = vmatpush.msra.mxu0 0.0
  %771 = vmatpush.msra.mxu0 0.0
  %772 = vmatpush.msra.mxu0 0.0
  %773 = vmatpush.msra.mxu0 0.0
  %774 = vmatpush.msra.mxu0 0.0
  %775 = vmatpush.msra.mxu0 0.0
  %776 = vmatpush.msra.mxu0 0.0
  %777 = vmatpush.msra.mxu0 0.0
  %778 = vmatpush.msra.mxu0 0.0
  %779 = vmatpush.msra.mxu0 0.0
  %780 = vmatpush.msra.mxu0 0.0
  %781 = vmatpush.msra.mxu0 %v178
  %782 = vmatpush.msra.mxu0 %v177
  %783 = vmatpush.msra.mxu0 %v176
  %784 = vmatpush.msra.mxu0 %v175
  %785 = vmatmul.f32.gmra.mxu0 %v767
  %v786 = vpop.f32.mrf.mxu0
  %v787 = vadd.f32 0.0, %v786
  %788 = vdwg.mxu0
  %v789 = vadd.f32 %v763, %v787
  %v790 = vxor.u32 %v789, 2147483648
  %v791 = vmul.f32 %v790, 1.442695
  %v792 = vpow.pop %v791
  %v793 = vadd.f32 %v792, 1.0
  %v794 = vrcp.pop %v793
  %v795 = vmul.f32 %v793, %v794
  %v796 = vsub.f32 1.0, %v795
  %v797 = vmul.f32 %v794, %v796
  %v798 = vadd.f32 %v794, %v797
  %vm799 = vweird.f32 %v793
  %vm800 = vweird.f32 %v794
  %vm801 = vmor %vm799, %vm800
  %v802 = vsel %vm801, %v794, %v798
  %v803 = vand.u32 2147483647, %v793
  %vm804 = vcmp.eq.f32.partialorder %v803, 8.507059e+37
  %v805 = vand.u32 %v793, 2147483648
  %v806 = vor.u32 1.1754944e-38, %v805
  %v807 = vsel %vm804, %v806, %v802
  %v808 = vmul.f32 1.0, %v807
  %v809 = vtanh.pop %v789
  %v810 = vmul.f32 %v808, %v755
  %812 = vrot.lane.b32.xlu0 %v809, 32
  %v813 = vpop.permute.xlu0 %812
  %v815 = vmul.f32 %v808, %v813
  %817 = vrot.lane.b32.xlu0 %v815, 32
  %v818 = vpop.permute.xlu0 %817
  %v820 = vadd.f32 %v810, %v818
  %v821 = vtanh.pop %v820
  %823 = vrot.lane.b32.xlu0 %v821, 32
  %v824 = vpop.permute.xlu0 %823
  %v826 = vmul.f32 %v808, %v824
  %s827 = scalar_lea.vmem [#allocation2], 80
  %v828 = vld [vmem:[%s827] sm:$0xff]
  %830 = vrot.lane.b32.xlu0 %v826, 64
  %v831 = vpop.permute.xlu0 %830
  %v832 = vsel %vm180, %v831, 0
  %834 = vmatpush.msra.mxu0 0.0
  %835 = vmatpush.msra.mxu0 0.0
  %836 = vmatpush.msra.mxu0 0.0
  %837 = vmatpush.msra.mxu0 0.0
  %838 = vmatpush.msra.mxu0 0.0
  %839 = vmatpush.msra.mxu0 0.0
  %840 = vmatpush.msra.mxu0 0.0
  %841 = vmatpush.msra.mxu0 0.0
  %842 = vmatpush.msra.mxu0 0.0
  %843 = vmatpush.msra.mxu0 0.0
  %844 = vmatpush.msra.mxu0 0.0
  %845 = vmatpush.msra.mxu0 0.0
  %846 = vmatpush.msra.mxu0 %v178
  %847 = vmatpush.msra.mxu0 %v177
  %848 = vmatpush.msra.mxu0 %v176
  %849 = vmatpush.msra.mxu0 %v175
  %850 = vmatmul.f32.gmra.mxu0 %v832
  %v851 = vpop.f32.mrf.mxu0
  %v852 = vadd.f32 0.0, %v851
  %853 = vdwg.mxu0
  %v854 = vadd.f32 %v828, %v852
  %v855 = vxor.u32 %v854, 2147483648
  %v856 = vmul.f32 %v855, 1.442695
  %v857 = vpow.pop %v856
  %v858 = vadd.f32 %v857, 1.0
  %v859 = vrcp.pop %v858
  %v860 = vmul.f32 %v858, %v859
  %v861 = vsub.f32 1.0, %v860
  %v862 = vmul.f32 %v859, %v861
  %v863 = vadd.f32 %v859, %v862
  %vm864 = vweird.f32 %v858
  %vm865 = vweird.f32 %v859
  %vm866 = vmor %vm864, %vm865
  %v867 = vsel %vm866, %v859, %v863
  %v868 = vand.u32 2147483647, %v858
  %vm869 = vcmp.eq.f32.partialorder %v868, 8.507059e+37
  %v870 = vand.u32 %v858, 2147483648
  %v871 = vor.u32 1.1754944e-38, %v870
  %v872 = vsel %vm869, %v871, %v867
  %v873 = vmul.f32 1.0, %v872
  %v874 = vtanh.pop %v854
  %v875 = vmul.f32 %v873, %v820
  %877 = vrot.lane.b32.xlu0 %v874, 32
  %v878 = vpop.permute.xlu0 %877
  %v880 = vmul.f32 %v873, %v878
  %882 = vrot.lane.b32.xlu0 %v880, 32
  %v883 = vpop.permute.xlu0 %882
  %v885 = vadd.f32 %v875, %v883
  %v886 = vtanh.pop %v885
  %888 = vrot.lane.b32.xlu0 %v886, 32
  %v889 = vpop.permute.xlu0 %888
  %v891 = vmul.f32 %v873, %v889
  %s892 = scalar_lea.vmem [#allocation2], 88
  %v893 = vld [vmem:[%s892] sm:$0xff]
  %895 = vrot.lane.b32.xlu0 %v891, 64
  %v896 = vpop.permute.xlu0 %895
  %v897 = vsel %vm180, %v896, 0
  %899 = vmatpush.msra.mxu0 0.0
  %900 = vmatpush.msra.mxu0 0.0
  %901 = vmatpush.msra.mxu0 0.0
  %902 = vmatpush.msra.mxu0 0.0
  %903 = vmatpush.msra.mxu0 0.0
  %904 = vmatpush.msra.mxu0 0.0
  %905 = vmatpush.msra.mxu0 0.0
  %906 = vmatpush.msra.mxu0 0.0
  %907 = vmatpush.msra.mxu0 0.0
  %908 = vmatpush.msra.mxu0 0.0
  %909 = vmatpush.msra.mxu0 0.0
  %910 = vmatpush.msra.mxu0 0.0
  %911 = vmatpush.msra.mxu0 %v178
  %912 = vmatpush.msra.mxu0 %v177
  %913 = vmatpush.msra.mxu0 %v176
  %914 = vmatpush.msra.mxu0 %v175
  %915 = vmatmul.f32.gmra.mxu0 %v897
  %v916 = vpop.f32.mrf.mxu0
  %v917 = vadd.f32 0.0, %v916
  %918 = vdwg.mxu0
  %v919 = vadd.f32 %v893, %v917
  %v920 = vxor.u32 %v919, 2147483648
  %v921 = vmul.f32 %v920, 1.442695
  %v922 = vpow.pop %v921
  %v923 = vadd.f32 %v922, 1.0
  %v924 = vrcp.pop %v923
  %v925 = vmul.f32 %v923, %v924
  %v926 = vsub.f32 1.0, %v925
  %v927 = vmul.f32 %v924, %v926
  %v928 = vadd.f32 %v924, %v927
  %vm929 = vweird.f32 %v923
  %vm930 = vweird.f32 %v924
  %vm931 = vmor %vm929, %vm930
  %v932 = vsel %vm931, %v924, %v928
  %v933 = vand.u32 2147483647, %v923
  %vm934 = vcmp.eq.f32.partialorder %v933, 8.507059e+37
  %v935 = vand.u32 %v923, 2147483648
  %v936 = vor.u32 1.1754944e-38, %v935
  %v937 = vsel %vm934, %v936, %v932
  %v938 = vmul.f32 1.0, %v937
  %v939 = vtanh.pop %v919
  %v940 = vmul.f32 %v938, %v885
  %942 = vrot.lane.b32.xlu0 %v939, 32
  %v943 = vpop.permute.xlu0 %942
  %v945 = vmul.f32 %v938, %v943
  %947 = vrot.lane.b32.xlu0 %v945, 32
  %v948 = vpop.permute.xlu0 %947
  %v950 = vadd.f32 %v940, %v948
  %v951 = vtanh.pop %v950
  %953 = vrot.lane.b32.xlu0 %v951, 32
  %v954 = vpop.permute.xlu0 %953
  %v956 = vmul.f32 %v938, %v954
  %s957 = scalar_lea.vmem [#allocation2], 96
  %v958 = vld [vmem:[%s957] sm:$0xff]
  %960 = vrot.lane.b32.xlu0 %v956, 64
  %v961 = vpop.permute.xlu0 %960
  %v962 = vsel %vm180, %v961, 0
  %964 = vmatpush.msra.mxu0 0.0
  %965 = vmatpush.msra.mxu0 0.0
  %966 = vmatpush.msra.mxu0 0.0
  %967 = vmatpush.msra.mxu0 0.0
  %968 = vmatpush.msra.mxu0 0.0
  %969 = vmatpush.msra.mxu0 0.0
  %970 = vmatpush.msra.mxu0 0.0
  %971 = vmatpush.msra.mxu0 0.0
  %972 = vmatpush.msra.mxu0 0.0
  %973 = vmatpush.msra.mxu0 0.0
  %974 = vmatpush.msra.mxu0 0.0
  %975 = vmatpush.msra.mxu0 0.0
  %976 = vmatpush.msra.mxu0 %v178
  %977 = vmatpush.msra.mxu0 %v177
  %978 = vmatpush.msra.mxu0 %v176
  %979 = vmatpush.msra.mxu0 %v175
  %980 = vmatmul.f32.gmra.mxu0 %v962
  %v981 = vpop.f32.mrf.mxu0
  %v982 = vadd.f32 0.0, %v981
  %983 = vdwg.mxu0
  %v984 = vadd.f32 %v958, %v982
  %v985 = vxor.u32 %v984, 2147483648
  %v986 = vmul.f32 %v985, 1.442695
  %v987 = vpow.pop %v986
  %v988 = vadd.f32 %v987, 1.0
  %v989 = vrcp.pop %v988
  %v990 = vmul.f32 %v988, %v989
  %v991 = vsub.f32 1.0, %v990
  %v992 = vmul.f32 %v989, %v991
  %v993 = vadd.f32 %v989, %v992
  %vm994 = vweird.f32 %v988
  %vm995 = vweird.f32 %v989
  %vm996 = vmor %vm994, %vm995
  %v997 = vsel %vm996, %v989, %v993
  %v998 = vand.u32 2147483647, %v988
  %vm999 = vcmp.eq.f32.partialorder %v998, 8.507059e+37
  %v1000 = vand.u32 %v988, 2147483648
  %v1001 = vor.u32 1.1754944e-38, %v1000
  %v1002 = vsel %vm999, %v1001, %v997
  %v1003 = vmul.f32 1.0, %v1002
  %v1004 = vtanh.pop %v984
  %v1005 = vmul.f32 %v1003, %v950
  %1007 = vrot.lane.b32.xlu0 %v1004, 32
  %v1008 = vpop.permute.xlu0 %1007
  %v1010 = vmul.f32 %v1003, %v1008
  %1012 = vrot.lane.b32.xlu0 %v1010, 32
  %v1013 = vpop.permute.xlu0 %1012
  %v1015 = vadd.f32 %v1005, %v1013
  %v1016 = vtanh.pop %v1015
  %1018 = vrot.lane.b32.xlu0 %v1016, 32
  %v1019 = vpop.permute.xlu0 %1018
  %v1021 = vmul.f32 %v1003, %v1019
  %s1022 = scalar_lea.vmem [#allocation2], 104
  %v1023 = vld [vmem:[%s1022] sm:$0xff]
  %1025 = vrot.lane.b32.xlu0 %v1021, 64
  %v1026 = vpop.permute.xlu0 %1025
  %v1027 = vsel %vm180, %v1026, 0
  %1029 = vmatpush.msra.mxu0 0.0
  %1030 = vmatpush.msra.mxu0 0.0
  %1031 = vmatpush.msra.mxu0 0.0
  %1032 = vmatpush.msra.mxu0 0.0
  %1033 = vmatpush.msra.mxu0 0.0
  %1034 = vmatpush.msra.mxu0 0.0
  %1035 = vmatpush.msra.mxu0 0.0
  %1036 = vmatpush.msra.mxu0 0.0
  %1037 = vmatpush.msra.mxu0 0.0
  %1038 = vmatpush.msra.mxu0 0.0
  %1039 = vmatpush.msra.mxu0 0.0
  %1040 = vmatpush.msra.mxu0 0.0
  %1041 = vmatpush.msra.mxu0 %v178
  %1042 = vmatpush.msra.mxu0 %v177
  %1043 = vmatpush.msra.mxu0 %v176
  %1044 = vmatpush.msra.mxu0 %v175
  %1045 = vmatmul.f32.gmra.mxu0 %v1027
  %v1046 = vpop.f32.mrf.mxu0
  %v1047 = vadd.f32 0.0, %v1046
  %1048 = vdwg.mxu0
  %v1049 = vadd.f32 %v1023, %v1047
  %v1050 = vxor.u32 %v1049, 2147483648
  %v1051 = vmul.f32 %v1050, 1.442695
  %v1052 = vpow.pop %v1051
  %v1053 = vadd.f32 %v1052, 1.0
  %v1054 = vrcp.pop %v1053
  %v1055 = vmul.f32 %v1053, %v1054
  %v1056 = vsub.f32 1.0, %v1055
  %v1057 = vmul.f32 %v1054, %v1056
  %v1058 = vadd.f32 %v1054, %v1057
  %vm1059 = vweird.f32 %v1053
  %vm1060 = vweird.f32 %v1054
  %vm1061 = vmor %vm1059, %vm1060
  %v1062 = vsel %vm1061, %v1054, %v1058
  %v1063 = vand.u32 2147483647, %v1053
  %vm1064 = vcmp.eq.f32.partialorder %v1063, 8.507059e+37
  %v1065 = vand.u32 %v1053, 2147483648
  %v1066 = vor.u32 1.1754944e-38, %v1065
  %v1067 = vsel %vm1064, %v1066, %v1062
  %v1068 = vmul.f32 1.0, %v1067
  %v1069 = vtanh.pop %v1049
  %v1070 = vmul.f32 %v1068, %v1015
  %1072 = vrot.lane.b32.xlu0 %v1069, 32
  %v1073 = vpop.permute.xlu0 %1072
  %v1075 = vmul.f32 %v1068, %v1073
  %1077 = vrot.lane.b32.xlu0 %v1075, 32
  %v1078 = vpop.permute.xlu0 %1077
  %v1080 = vadd.f32 %v1070, %v1078
  %v1081 = vtanh.pop %v1080
  %1083 = vrot.lane.b32.xlu0 %v1081, 32
  %v1084 = vpop.permute.xlu0 %1083
  %v1086 = vmul.f32 %v1068, %v1084
  %s1087 = scalar_lea.vmem [#allocation2], 112
  %v1088 = vld [vmem:[%s1087] sm:$0xff]
  %1090 = vrot.lane.b32.xlu0 %v1086, 64
  %v1091 = vpop.permute.xlu0 %1090
  %v1092 = vsel %vm180, %v1091, 0
  %1094 = vmatpush.msra.mxu0 0.0
  %1095 = vmatpush.msra.mxu0 0.0
  %1096 = vmatpush.msra.mxu0 0.0
  %1097 = vmatpush.msra.mxu0 0.0
  %1098 = vmatpush.msra.mxu0 0.0
  %1099 = vmatpush.msra.mxu0 0.0
  %1100 = vmatpush.msra.mxu0 0.0
  %1101 = vmatpush.msra.mxu0 0.0
  %1102 = vmatpush.msra.mxu0 0.0
  %1103 = vmatpush.msra.mxu0 0.0
  %1104 = vmatpush.msra.mxu0 0.0
  %1105 = vmatpush.msra.mxu0 0.0
  %1106 = vmatpush.msra.mxu0 %v178
  %1107 = vmatpush.msra.mxu0 %v177
  %1108 = vmatpush.msra.mxu0 %v176
  %1109 = vmatpush.msra.mxu0 %v175
  %1110 = vmatmul.f32.gmra.mxu0 %v1092
  %v1111 = vpop.f32.mrf.mxu0
  %v1112 = vadd.f32 0.0, %v1111
  %1113 = vdwg.mxu0
  %v1114 = vadd.f32 %v1088, %v1112
  %v1115 = vxor.u32 %v1114, 2147483648
  %v1116 = vmul.f32 %v1115, 1.442695
  %v1117 = vpow.pop %v1116
  %v1118 = vadd.f32 %v1117, 1.0
  %v1119 = vrcp.pop %v1118
  %v1120 = vmul.f32 %v1118, %v1119
  %v1121 = vsub.f32 1.0, %v1120
  %v1122 = vmul.f32 %v1119, %v1121
  %v1123 = vadd.f32 %v1119, %v1122
  %vm1124 = vweird.f32 %v1118
  %vm1125 = vweird.f32 %v1119
  %vm1126 = vmor %vm1124, %vm1125
  %v1127 = vsel %vm1126, %v1119, %v1123
  %v1128 = vand.u32 2147483647, %v1118
  %vm1129 = vcmp.eq.f32.partialorder %v1128, 8.507059e+37
  %v1130 = vand.u32 %v1118, 2147483648
  %v1131 = vor.u32 1.1754944e-38, %v1130
  %v1132 = vsel %vm1129, %v1131, %v1127
  %v1133 = vmul.f32 1.0, %v1132
  %v1134 = vtanh.pop %v1114
  %v1135 = vmul.f32 %v1133, %v1080
  %1137 = vrot.lane.b32.xlu0 %v1134, 32
  %v1138 = vpop.permute.xlu0 %1137
  %v1140 = vmul.f32 %v1133, %v1138
  %1142 = vrot.lane.b32.xlu0 %v1140, 32
  %v1143 = vpop.permute.xlu0 %1142
  %v1145 = vadd.f32 %v1135, %v1143
  %v1146 = vtanh.pop %v1145
  %1148 = vrot.lane.b32.xlu0 %v1146, 32
  %v1149 = vpop.permute.xlu0 %1148
  %v1151 = vmul.f32 %v1133, %v1149
  %s1152 = scalar_lea.vmem [#allocation2], 120
  %v1153 = vld [vmem:[%s1152] sm:$0xff]
  %1155 = vrot.lane.b32.xlu0 %v1151, 64
  %v1156 = vpop.permute.xlu0 %1155
  %v1157 = vsel %vm180, %v1156, 0
  %1159 = vmatpush.msra.mxu0 0.0
  %1160 = vmatpush.msra.mxu0 0.0
  %1161 = vmatpush.msra.mxu0 0.0
  %1162 = vmatpush.msra.mxu0 0.0
  %1163 = vmatpush.msra.mxu0 0.0
  %1164 = vmatpush.msra.mxu0 0.0
  %1165 = vmatpush.msra.mxu0 0.0
  %1166 = vmatpush.msra.mxu0 0.0
  %1167 = vmatpush.msra.mxu0 0.0
  %1168 = vmatpush.msra.mxu0 0.0
  %1169 = vmatpush.msra.mxu0 0.0
  %1170 = vmatpush.msra.mxu0 0.0
  %1171 = vmatpush.msra.mxu0 %v178
  %1172 = vmatpush.msra.mxu0 %v177
  %1173 = vmatpush.msra.mxu0 %v176
  %1174 = vmatpush.msra.mxu0 %v175
  %1175 = vmatmul.f32.gmra.mxu0 %v1157
  %v1176 = vpop.f32.mrf.mxu0
  %v1177 = vadd.f32 0.0, %v1176
  %1178 = vdwg.mxu0
  %v1179 = vadd.f32 %v1153, %v1177
  %v1180 = vxor.u32 %v1179, 2147483648
  %v1181 = vmul.f32 %v1180, 1.442695
  %v1182 = vpow.pop %v1181
  %v1183 = vadd.f32 %v1182, 1.0
  %v1184 = vrcp.pop %v1183
  %v1185 = vmul.f32 %v1183, %v1184
  %v1186 = vsub.f32 1.0, %v1185
  %v1187 = vmul.f32 %v1184, %v1186
  %v1188 = vadd.f32 %v1184, %v1187
  %vm1189 = vweird.f32 %v1183
  %vm1190 = vweird.f32 %v1184
  %vm1191 = vmor %vm1189, %vm1190
  %v1192 = vsel %vm1191, %v1184, %v1188
  %v1193 = vand.u32 2147483647, %v1183
  %vm1194 = vcmp.eq.f32.partialorder %v1193, 8.507059e+37
  %v1195 = vand.u32 %v1183, 2147483648
  %v1196 = vor.u32 1.1754944e-38, %v1195
  %v1197 = vsel %vm1194, %v1196, %v1192
  %v1198 = vmul.f32 1.0, %v1197
  %v1199 = vtanh.pop %v1179
  %v1200 = vmul.f32 %v1198, %v1145
  %1202 = vrot.lane.b32.xlu0 %v1199, 32
  %v1203 = vpop.permute.xlu0 %1202
  %v1205 = vmul.f32 %v1198, %v1203
  %1207 = vrot.lane.b32.xlu0 %v1205, 32
  %v1208 = vpop.permute.xlu0 %1207
  %v1210 = vadd.f32 %v1200, %v1208
  %v1211 = vtanh.pop %v1210
  %1213 = vrot.lane.b32.xlu0 %v1211, 32
  %v1214 = vpop.permute.xlu0 %1213
  %v1216 = vmul.f32 %v1198, %v1214
  %1218 = vrot.lane.b32.xlu0 %v1216, 64
  %v1219 = vpop.permute.xlu0 %1218
  %1221 = vst.msk [vmem:[%s4] sm:$0xff] %vm180, %v1219
  // Predicated region
  $region18: #{lstm_module_forward.1} parent=0 // pred_check
    _
  $region19: #{lstm_module_forward.1} parent=0 // pred_check_branch
    %1223 = sbr.rel (0) target = $region21
  $region20: #{lstm_module_forward.1} parent=0 // pred_region
    _
  $region21: #{lstm_module_forward.1} parent=0 // pred_fallthru
    _
  // Predicated region
  $region22: #{lstm_module_forward.1} parent=0 // pred_check
    _
  $region23: #{lstm_module_forward.1} parent=0 // pred_check_branch
    %1225 = sbr.rel (0) target = $region25
  $region24: #{lstm_module_forward.1} parent=0 // pred_region
    _
  $region25: #{lstm_module_forward.1} parent=0 // pred_fallthru
    _

</llo_original>
